<compile_context>
chip_gen: v5e
topology: v5e:2x2
jax: 0.10.0
libtpu: 0.0.40
codegen_flags: <defaults>
</compile_context>

<pallas_src>
import math
import jax
import jax.numpy as jnp
from jax.experimental import pallas as pl
from jax.experimental.pallas import tpu as pltpu

# ---- model hyper-parameters (small, synthetic) -----------------------------
B = 2            # batch
N = 16           # query sequence length
M = 8            # context sequence length
QUERY_DIM = 32
CONTEXT_DIM = 32
HEADS = 4
DIM_HEAD = 16
INNER = HEADS * DIM_HEAD   # 64
SCALE = 1.0 / math.sqrt(DIM_HEAD)

LANE = 128


def _mecattn_kernel(x_ref, ctx_ref, ctxt_ref, wq_ref, wkt_ref, wv_ref, wo_ref,
                    bo_ref, o_ref):
    # Shapes seen by the kernel (per grid step):
    #   x_ref    (bpg*N, Dq)      bf16   flattened queries
    #   ctx_ref  (bpg*M, Dc)      bf16   flattened context
    #   ctxt_ref (bpg, Dc, M)     bf16   context pre-transposed (for K^T)
    #   wq_ref   (H, Dq, dh)      bf16   scale already folded in
    #   wkt_ref  (H, dh, Dc)      bf16   per-head Wk, pre-transposed
    #   wv_ref   (H, Dc, dh)      bf16
    #   wo_ref   (H, dh, Dq_pad)  bf16   lane-padded to a multiple of 128
    #   bo_ref   (1, Dq_pad)      f32
    #   o_ref    (bpg*N, Dq_pad)  f32    lane-dense output slab
    heads = wq_ref.shape[0]
    bpg = ctxt_ref.shape[0]
    n = x_ref.shape[0] // bpg
    m = ctx_ref.shape[0] // bpg
    dq_pad = o_ref.shape[1]

    x = x_ref[...]                      # (bpg*N, Dq)  bf16
    ctx = ctx_ref[...]                  # (bpg*M, Dc)  bf16

    out_acc = jnp.zeros((x.shape[0], dq_pad), jnp.float32)

    for h in range(heads):              # static loop, HEADS is tiny
        # Batched q / v projections over the whole per-step batch (one MXU
        # matmul per weight instead of per-batch (16,32)x(32,16) matmuls).
        q_h = jnp.dot(x, wq_ref[h],
                      preferred_element_type=jnp.float32).astype(jnp.bfloat16)   # (bpg*N, dh)
        v_h = jnp.dot(ctx, wv_ref[h],
                      preferred_element_type=jnp.float32).astype(jnp.bfloat16)   # (bpg*M, dh)

        oh_parts = []
        for bi in range(bpg):           # per-batch: scores / softmax / PV only
            # K produced directly in transposed layout -> plain NN score matmul.
            k_t = jnp.dot(wkt_ref[h], ctxt_ref[bi],
                          preferred_element_type=jnp.float32).astype(jnp.bfloat16)  # (dh, M)

            # Sublane slices at multiples of 8 -> vreg-aligned, no lane relayout.
            q_b = q_h[bi * n:(bi + 1) * n, :]            # (N, dh)
            v_b = v_h[bi * m:(bi + 1) * m, :]            # (M, dh)

            s = jnp.dot(q_b, k_t, preferred_element_type=jnp.float32)           # (N, M) f32

            # Softmax fully in f32 (max-subtract for stability); EUP reciprocal.
            s = s - jnp.max(s, axis=-1, keepdims=True)
            p = jnp.exp(s)
            p = p * pl.reciprocal(jnp.sum(p, axis=-1, keepdims=True), approx=True)

            oh_parts.append(jnp.dot(p.astype(jnp.bfloat16), v_b,
                                    preferred_element_type=jnp.float32))         # (N, dh)

        oh = oh_parts[0] if bpg == 1 else jnp.concatenate(oh_parts, axis=0)      # (bpg*N, dh)

        # Fused, batched output projection for this head.  Keep the f32
        # accumulator in += form (MRB in-place accumulate on v7x).
        out_acc = out_acc + jnp.dot(oh.astype(jnp.bfloat16), wo_ref[h],
                                    preferred_element_type=jnp.float32)          # (bpg*N, Dq_pad)

    out_acc = out_acc + bo_ref[...]     # bias added once (broadcast over rows)

    # Single lane-dense store: last dim is a multiple of 128 -> unmasked vst.
    o_ref[...] = out_acc.astype(o_ref.dtype)


def _batch_per_grid_step(b):
    """v7x has 2 TensorCores/chip -> keep grid=(B,) parallel (1 batch/step).
    v5e/v6e have 1 TC -> the grid is a sequential loop; collapse it and loop
    over the batch inside the kernel (b batch/step) to kill per-step overhead.
    (Only sensible at toy sizes; see TODO(synk) above for real LDM shapes.)"""
    try:
        kind = jax.devices()[0].device_kind.lower()
    except Exception:
        kind = ""
    multi_tc = ("v7" in kind) or ("7x" in kind)
    return 1 if multi_tc else b


def memory_efficient_cross_attention(x, context, wq, wk, wv, wo, bo):
    """x: (B, N, Dq) f32, context: (B, M, Dc) f32 -> (B, N, Dq) f32."""
    b, n, dq = x.shape
    _, m, dc = context.shape
    inner = wq.shape[1]
    heads = HEADS
    dh = inner // heads
    assert n % 8 == 0 and m % 8 == 0, "toy kernel assumes 8-aligned sequence lengths"

    dq_pad = ((dq + LANE - 1) // LANE) * LANE   # lane-dense output width

    bpg = _batch_per_grid_step(b)               # batch elements per grid step
    grid = (b // bpg,)

    bf16 = jnp.bfloat16

    # Activations: flattened (sublane-batched) + a pre-transposed context for K^T.
    x_flat = x.reshape(b * n, dq).astype(bf16)                       # (B*N, Dq)
    ctx_flat = context.reshape(b * m, dc).astype(bf16)               # (B*M, Dc)
    ctx_t = context.transpose(0, 2, 1).astype(bf16)                  # (B, Dc, M)

    # Per-head weight layouts (leading head axis -> free ref indexing in-kernel).
    # Attention scale folded into Wq once, here.
    wq_h = (wq * SCALE).reshape(dq, heads, dh).transpose(1, 0, 2).astype(bf16)   # (H, Dq, dh)
    wkt_h = wk.reshape(dc, heads, dh).transpose(1, 2, 0).astype(bf16)            # (H, dh, Dc)
    wv_h = wv.reshape(dc, heads, dh).transpose(1, 0, 2).astype(bf16)             # (H, Dc, dh)
    # Lane-pad Wo / bias so the kernel's output slab is 128-lane dense.
    wo_h = jnp.pad(wo.reshape(heads, dh, dq),
                   ((0, 0), (0, 0), (0, dq_pad - dq))).astype(bf16)              # (H, dh, Dq_pad)
    bo_pad = jnp.pad(bo.astype(jnp.float32), ((0, 0), (0, dq_pad - dq)))         # (1, Dq_pad)

    # TODO(synk): emit bf16 output instead of f32 if the downstream consumer
    # tolerates it (halves HBM writeback at real LDM sizes).
    out_pad = pl.pallas_call(
        _mecattn_kernel,
        out_shape=jax.ShapeDtypeStruct((b * n, dq_pad), jnp.float32),
        grid_spec=pltpu.PrefetchScalarGridSpec(
            num_scalar_prefetch=0,
            grid=grid,
            in_specs=[
                pl.BlockSpec((bpg * n, dq), lambda i: (i, 0)),        # x (flattened)
                pl.BlockSpec((bpg * m, dc), lambda i: (i, 0)),        # context (flattened)
                pl.BlockSpec((bpg, dc, m), lambda i: (i, 0, 0)),      # context^T
                pl.BlockSpec((heads, dq, dh), lambda i: (0, 0, 0)),   # Wq (per-head)
                pl.BlockSpec((heads, dh, dc), lambda i: (0, 0, 0)),   # Wk^T (per-head)
                pl.BlockSpec((heads, dc, dh), lambda i: (0, 0, 0)),   # Wv (per-head)
                pl.BlockSpec((heads, dh, dq_pad), lambda i: (0, 0, 0)),  # Wo (per-head, padded)
                pl.BlockSpec((1, dq_pad), lambda i: (0, 0)),          # bias (padded)
            ],
            out_specs=pl.BlockSpec((bpg * n, dq_pad), lambda i: (i, 0)),
        ),
        compiler_params=pltpu.CompilerParams(
            dimension_semantics=("parallel",)),
    )(x_flat, ctx_flat, ctx_t, wq_h, wkt_h, wv_h, wo_h, bo_pad)

    # Un-pad / un-flatten outside the kernel (pure layout plumbing).
    return out_pad.reshape(b, n, dq_pad)[:, :, :dq]


def _reference(x, context, wq, wk, wv, wo, bo):
    q = x @ wq
    k = context @ wk
    v = context @ wv
    bsz, n, _ = q.shape
    m = k.shape[1]
    qh = q.reshape(bsz, n, HEADS, DIM_HEAD).transpose(0, 2, 1, 3)
    kh = k.reshape(bsz, m, HEADS, DIM_HEAD).transpose(0, 2, 1, 3)
    vh = v.reshape(bsz, m, HEADS, DIM_HEAD).transpose(0, 2, 1, 3)
    s = jnp.einsum("bhnd,bhmd->bhnm", qh, kh) * SCALE
    p = jax.nn.softmax(s, axis=-1)
    o = jnp.einsum("bhnm,bhmd->bhnd", p, vh)
    o = o.transpose(0, 2, 1, 3).reshape(bsz, n, INNER)
    return o @ wo + bo


if __name__ == "__main__":
    key = jax.random.PRNGKey(0)
    kx, kc, k1, k2, k3, k4, k5 = jax.random.split(key, 7)

    x = jax.random.normal(kx, (B, N, QUERY_DIM), dtype=jnp.float32)
    context = jax.random.normal(kc, (B, M, CONTEXT_DIM), dtype=jnp.float32)

    # Deterministic synthetic parameters (nn.Linear-style scale).
    wq = jax.random.normal(k1, (QUERY_DIM, INNER), jnp.float32) / math.sqrt(QUERY_DIM)
    wk = jax.random.normal(k2, (CONTEXT_DIM, INNER), jnp.float32) / math.sqrt(CONTEXT_DIM)
    wv = jax.random.normal(k3, (CONTEXT_DIM, INNER), jnp.float32) / math.sqrt(CONTEXT_DIM)
    wo = jax.random.normal(k4, (INNER, QUERY_DIM), jnp.float32) / math.sqrt(INNER)
    bo = jax.random.normal(k5, (1, QUERY_DIM), jnp.float32) * 0.01

    out = memory_efficient_cross_attention(x, context, wq, wk, wv, wo, bo)
    out = jax.block_until_ready(out)

    ref = _reference(x, context, wq, wk, wv, wo, bo)
    assert out.shape == (B, N, QUERY_DIM)
    # Tolerance loosened vs the f32 reference because MXU operands are bf16
    # (accumulation is still f32, softmax fully f32).
    assert jnp.allclose(out, ref, atol=5e-2, rtol=5e-2), "mismatch vs reference"
    print("KERNEL_OK")
</pallas_src>

<mosaic_0001>
module attributes {stable_mosaic.version = 11 : i64} {
  func.func @_mecattn_kernel(%arg0: i32, %arg1: memref<32x32xbf16, #tpu.memory_space<vmem>>, %arg2: memref<16x32xbf16, #tpu.memory_space<vmem>>, %arg3: memref<2x32x8xbf16, #tpu.memory_space<vmem>>, %arg4: memref<4x32x16xbf16, #tpu.memory_space<vmem>>, %arg5: memref<4x16x32xbf16, #tpu.memory_space<vmem>>, %arg6: memref<4x32x16xbf16, #tpu.memory_space<vmem>>, %arg7: memref<4x16x128xbf16, #tpu.memory_space<vmem>>, %arg8: memref<1x128xf32, #tpu.memory_space<vmem>>, %arg9: memref<32x128xf32, #tpu.memory_space<vmem>>) attributes {dimension_semantics = [#tpu.dimension_semantics<parallel>], iteration_bounds = array<i64: 1>, scalar_prefetch = 0 : i64, scratch_operands = 0 : i64, tpu.core_type = #tpu.core_type<tc>, window_params = [{transform_indices = @transform_0, window_bounds = array<i64: 32, 32>}, {transform_indices = @transform_1, window_bounds = array<i64: 16, 32>}, {transform_indices = @transform_2, window_bounds = array<i64: 2, 32, 8>}, {pipeline_mode = #tpu.pipeline_mode<synchronous>, transform_indices = @transform_3, window_bounds = array<i64: 4, 32, 16>}, {pipeline_mode = #tpu.pipeline_mode<synchronous>, transform_indices = @transform_4, window_bounds = array<i64: 4, 16, 32>}, {pipeline_mode = #tpu.pipeline_mode<synchronous>, transform_indices = @transform_5, window_bounds = array<i64: 4, 32, 16>}, {pipeline_mode = #tpu.pipeline_mode<synchronous>, transform_indices = @transform_6, window_bounds = array<i64: 4, 16, 128>}, {pipeline_mode = #tpu.pipeline_mode<synchronous>, transform_indices = @transform_7, window_bounds = array<i64: 1, 128>}, {transform_indices = @transform_8, window_bounds = array<i64: 32, 128>}]} {
    %c0 = arith.constant 0 : index
    %c0_0 = arith.constant 0 : index
    %0 = vector.load %arg1[%c0, %c0_0] : memref<32x32xbf16, #tpu.memory_space<vmem>>, vector<32x32xbf16>
    %c0_1 = arith.constant 0 : index
    %c0_2 = arith.constant 0 : index
    %1 = vector.load %arg2[%c0_1, %c0_2] : memref<16x32xbf16, #tpu.memory_space<vmem>>, vector<16x32xbf16>
    %cst = arith.constant 0.000000e+00 : f32
    %2 = vector.broadcast %cst : f32 to vector<32x128xf32>
    %c0_3 = arith.constant 0 : index
    %c0_4 = arith.constant 0 : index
    %c0_5 = arith.constant 0 : index
    %3 = vector.load %arg4[%c0_3, %c0_4, %c0_5] : memref<4x32x16xbf16, #tpu.memory_space<vmem>>, vector<1x32x16xbf16>
    %4 = vector.shape_cast %3 : vector<1x32x16xbf16> to vector<32x16xbf16>
    %cst_6 = arith.constant dense<0.000000e+00> : vector<32x16xf32>
    %5 = tpu.matmul %0, %4, %cst_6 {dimension_numbers = #tpu.dot_dimension_numbers<[1], [0], [0], [1], [0, 0, 1, 1], [], []>} : vector<32x32xbf16>, vector<32x16xbf16>, vector<32x16xf32> -> vector<32x16xf32>
    %6 = arith.truncf %5 : vector<32x16xf32> to vector<32x16xbf16>
    %c0_7 = arith.constant 0 : index
    %c0_8 = arith.constant 0 : index
    %c0_9 = arith.constant 0 : index
    %7 = vector.load %arg6[%c0_7, %c0_8, %c0_9] : memref<4x32x16xbf16, #tpu.memory_space<vmem>>, vector<1x32x16xbf16>
    %8 = vector.shape_cast %7 : vector<1x32x16xbf16> to vector<32x16xbf16>
    %cst_10 = arith.constant dense<0.000000e+00> : vector<16x16xf32>
    %9 = tpu.matmul %1, %8, %cst_10 {dimension_numbers = #tpu.dot_dimension_numbers<[1], [0], [0], [1], [0, 0, 1, 1], [], []>} : vector<16x32xbf16>, vector<32x16xbf16>, vector<16x16xf32> -> vector<16x16xf32>
    %10 = arith.truncf %9 : vector<16x16xf32> to vector<16x16xbf16>
    %c0_11 = arith.constant 0 : index
    %c0_12 = arith.constant 0 : index
    %c0_13 = arith.constant 0 : index
    %11 = vector.load %arg5[%c0_11, %c0_12, %c0_13] : memref<4x16x32xbf16, #tpu.memory_space<vmem>>, vector<1x16x32xbf16>
    %12 = vector.shape_cast %11 : vector<1x16x32xbf16> to vector<16x32xbf16>
    %c0_14 = arith.constant 0 : index
    %c0_15 = arith.constant 0 : index
    %c0_16 = arith.constant 0 : index
    %13 = vector.load %arg3[%c0_14, %c0_15, %c0_16] : memref<2x32x8xbf16, #tpu.memory_space<vmem>>, vector<1x32x8xbf16>
    %14 = vector.shape_cast %13 : vector<1x32x8xbf16> to vector<32x8xbf16>
    %cst_17 = arith.constant dense<0.000000e+00> : vector<16x8xf32>
    %15 = tpu.matmul %12, %14, %cst_17 {dimension_numbers = #tpu.dot_dimension_numbers<[1], [0], [0], [1], [0, 0, 1, 1], [], []>} : vector<16x32xbf16>, vector<32x8xbf16>, vector<16x8xf32> -> vector<16x8xf32>
    %16 = arith.truncf %15 : vector<16x8xf32> to vector<16x8xbf16>
    %17 = vector.extract_strided_slice %6 {offsets = [0, 0], sizes = [16, 16], strides = [1, 1]} : vector<32x16xbf16> to vector<16x16xbf16>
    %18 = vector.extract_strided_slice %10 {offsets = [0, 0], sizes = [8, 16], strides = [1, 1]} : vector<16x16xbf16> to vector<8x16xbf16>
    %cst_18 = arith.constant dense<0.000000e+00> : vector<16x8xf32>
    %19 = tpu.matmul %17, %16, %cst_18 {dimension_numbers = #tpu.dot_dimension_numbers<[1], [0], [0], [1], [0, 0, 1, 1], [], []>} : vector<16x16xbf16>, vector<16x8xbf16>, vector<16x8xf32> -> vector<16x8xf32>
    %cst_19 = arith.constant dense<0xFF800000> : vector<16xf32>
    %20 = vector.multi_reduction <maximumf>, %19, %cst_19 [1] : vector<16x8xf32> to vector<16xf32>
    %21 = vector.shape_cast %20 : vector<16xf32> to vector<16x1xf32>
    %22 = vector.broadcast %21 : vector<16x1xf32> to vector<16x8xf32>
    %23 = arith.subf %19, %22 : vector<16x8xf32>
    %24 = math.exp %23 : vector<16x8xf32>
    %cst_20 = arith.constant dense<0.000000e+00> : vector<16xf32>
    %25 = vector.multi_reduction <add>, %24, %cst_20 [1] : vector<16x8xf32> to vector<16xf32>
    %26 = vector.shape_cast %25 : vector<16xf32> to vector<16x1xf32>
    %27 = tpu.reciprocal %26 {approx = true} : vector<16x1xf32> -> vector<16x1xf32>
    %28 = vector.broadcast %27 : vector<16x1xf32> to vector<16x8xf32>
    %29 = arith.mulf %24, %28 : vector<16x8xf32>
    %30 = arith.truncf %29 : vector<16x8xf32> to vector<16x8xbf16>
    %cst_21 = arith.constant dense<0.000000e+00> : vector<16x16xf32>
    %31 = tpu.matmul %30, %18, %cst_21 {dimension_numbers = #tpu.dot_dimension_numbers<[1], [0], [0], [1], [0, 0, 1, 1], [], []>} : vector<16x8xbf16>, vector<8x16xbf16>, vector<16x16xf32> -> vector<16x16xf32>
    %c0_22 = arith.constant 0 : index
    %c0_23 = arith.constant 0 : index
    %c0_24 = arith.constant 0 : index
    %32 = vector.load %arg5[%c0_22, %c0_23, %c0_24] : memref<4x16x32xbf16, #tpu.memory_space<vmem>>, vector<1x16x32xbf16>
    %33 = vector.shape_cast %32 : vector<1x16x32xbf16> to vector<16x32xbf16>
    %c1 = arith.constant 1 : index
    %c0_25 = arith.constant 0 : index
    %c0_26 = arith.constant 0 : index
    %34 = vector.load %arg3[%c1, %c0_25, %c0_26] : memref<2x32x8xbf16, #tpu.memory_space<vmem>>, vector<1x32x8xbf16>
    %35 = vector.shape_cast %34 : vector<1x32x8xbf16> to vector<32x8xbf16>
    %cst_27 = arith.constant dense<0.000000e+00> : vector<16x8xf32>
    %36 = tpu.matmul %33, %35, %cst_27 {dimension_numbers = #tpu.dot_dimension_numbers<[1], [0], [0], [1], [0, 0, 1, 1], [], []>} : vector<16x32xbf16>, vector<32x8xbf16>, vector<16x8xf32> -> vector<16x8xf32>
    %37 = arith.truncf %36 : vector<16x8xf32> to vector<16x8xbf16>
    %38 = vector.extract_strided_slice %6 {offsets = [16, 0], sizes = [16, 16], strides = [1, 1]} : vector<32x16xbf16> to vector<16x16xbf16>
    %39 = vector.extract_strided_slice %10 {offsets = [8, 0], sizes = [8, 16], strides = [1, 1]} : vector<16x16xbf16> to vector<8x16xbf16>
    %cst_28 = arith.constant dense<0.000000e+00> : vector<16x8xf32>
    %40 = tpu.matmul %38, %37, %cst_28 {dimension_numbers = #tpu.dot_dimension_numbers<[1], [0], [0], [1], [0, 0, 1, 1], [], []>} : vector<16x16xbf16>, vector<16x8xbf16>, vector<16x8xf32> -> vector<16x8xf32>
    %cst_29 = arith.constant dense<0xFF800000> : vector<16xf32>
    %41 = vector.multi_reduction <maximumf>, %40, %cst_29 [1] : vector<16x8xf32> to vector<16xf32>
    %42 = vector.shape_cast %41 : vector<16xf32> to vector<16x1xf32>
    %43 = vector.broadcast %42 : vector<16x1xf32> to vector<16x8xf32>
    %44 = arith.subf %40, %43 : vector<16x8xf32>
    %45 = math.exp %44 : vector<16x8xf32>
    %cst_30 = arith.constant dense<0.000000e+00> : vector<16xf32>
    %46 = vector.multi_reduction <add>, %45, %cst_30 [1] : vector<16x8xf32> to vector<16xf32>
    %47 = vector.shape_cast %46 : vector<16xf32> to vector<16x1xf32>
    %48 = tpu.reciprocal %47 {approx = true} : vector<16x1xf32> -> vector<16x1xf32>
    %49 = vector.broadcast %48 : vector<16x1xf32> to vector<16x8xf32>
    %50 = arith.mulf %45, %49 : vector<16x8xf32>
    %51 = arith.truncf %50 : vector<16x8xf32> to vector<16x8xbf16>
    %cst_31 = arith.constant dense<0.000000e+00> : vector<16x16xf32>
    %52 = tpu.matmul %51, %39, %cst_31 {dimension_numbers = #tpu.dot_dimension_numbers<[1], [0], [0], [1], [0, 0, 1, 1], [], []>} : vector<16x8xbf16>, vector<8x16xbf16>, vector<16x16xf32> -> vector<16x16xf32>
    %53 = tpu.concatenate %31, %52 in 0 : vector<16x16xf32>, vector<16x16xf32> -> vector<32x16xf32>
    %54 = arith.truncf %53 : vector<32x16xf32> to vector<32x16xbf16>
    %c0_32 = arith.constant 0 : index
    %c0_33 = arith.constant 0 : index
    %c0_34 = arith.constant 0 : index
    %55 = vector.load %arg7[%c0_32, %c0_33, %c0_34] : memref<4x16x128xbf16, #tpu.memory_space<vmem>>, vector<1x16x128xbf16>
    %56 = vector.shape_cast %55 : vector<1x16x128xbf16> to vector<16x128xbf16>
    %cst_35 = arith.constant dense<0.000000e+00> : vector<32x128xf32>
    %57 = tpu.matmul %54, %56, %cst_35 {dimension_numbers = #tpu.dot_dimension_numbers<[1], [0], [0], [1], [0, 0, 1, 1], [], []>} : vector<32x16xbf16>, vector<16x128xbf16>, vector<32x128xf32> -> vector<32x128xf32>
    %58 = arith.addf %2, %57 : vector<32x128xf32>
    %c1_36 = arith.constant 1 : index
    %c0_37 = arith.constant 0 : index
    %c0_38 = arith.constant 0 : index
    %59 = vector.load %arg4[%c1_36, %c0_37, %c0_38] : memref<4x32x16xbf16, #tpu.memory_space<vmem>>, vector<1x32x16xbf16>
    %60 = vector.shape_cast %59 : vector<1x32x16xbf16> to vector<32x16xbf16>
    %cst_39 = arith.constant dense<0.000000e+00> : vector<32x16xf32>
    %61 = tpu.matmul %0, %60, %cst_39 {dimension_numbers = #tpu.dot_dimension_numbers<[1], [0], [0], [1], [0, 0, 1, 1], [], []>} : vector<32x32xbf16>, vector<32x16xbf16>, vector<32x16xf32> -> vector<32x16xf32>
    %62 = arith.truncf %61 : vector<32x16xf32> to vector<32x16xbf16>
    %c1_40 = arith.constant 1 : index
    %c0_41 = arith.constant 0 : index
    %c0_42 = arith.constant 0 : index
    %63 = vector.load %arg6[%c1_40, %c0_41, %c0_42] : memref<4x32x16xbf16, #tpu.memory_space<vmem>>, vector<1x32x16xbf16>
    %64 = vector.shape_cast %63 : vector<1x32x16xbf16> to vector<32x16xbf16>
    %cst_43 = arith.constant dense<0.000000e+00> : vector<16x16xf32>
    %65 = tpu.matmul %1, %64, %cst_43 {dimension_numbers = #tpu.dot_dimension_numbers<[1], [0], [0], [1], [0, 0, 1, 1], [], []>} : vector<16x32xbf16>, vector<32x16xbf16>, vector<16x16xf32> -> vector<16x16xf32>
    %66 = arith.truncf %65 : vector<16x16xf32> to vector<16x16xbf16>
    %c1_44 = arith.constant 1 : index
    %c0_45 = arith.constant 0 : index
    %c0_46 = arith.constant 0 : index
    %67 = vector.load %arg5[%c1_44, %c0_45, %c0_46] : memref<4x16x32xbf16, #tpu.memory_space<vmem>>, vector<1x16x32xbf16>
    %68 = vector.shape_cast %67 : vector<1x16x32xbf16> to vector<16x32xbf16>
    %c0_47 = arith.constant 0 : index
    %c0_48 = arith.constant 0 : index
    %c0_49 = arith.constant 0 : index
    %69 = vector.load %arg3[%c0_47, %c0_48, %c0_49] : memref<2x32x8xbf16, #tpu.memory_space<vmem>>, vector<1x32x8xbf16>
    %70 = vector.shape_cast %69 : vector<1x32x8xbf16> to vector<32x8xbf16>
    %cst_50 = arith.constant dense<0.000000e+00> : vector<16x8xf32>
    %71 = tpu.matmul %68, %70, %cst_50 {dimension_numbers = #tpu.dot_dimension_numbers<[1], [0], [0], [1], [0, 0, 1, 1], [], []>} : vector<16x32xbf16>, vector<32x8xbf16>, vector<16x8xf32> -> vector<16x8xf32>
    %72 = arith.truncf %71 : vector<16x8xf32> to vector<16x8xbf16>
    %73 = vector.extract_strided_slice %62 {offsets = [0, 0], sizes = [16, 16], strides = [1, 1]} : vector<32x16xbf16> to vector<16x16xbf16>
    %74 = vector.extract_strided_slice %66 {offsets = [0, 0], sizes = [8, 16], strides = [1, 1]} : vector<16x16xbf16> to vector<8x16xbf16>
    %cst_51 = arith.constant dense<0.000000e+00> : vector<16x8xf32>
    %75 = tpu.matmul %73, %72, %cst_51 {dimension_numbers = #tpu.dot_dimension_numbers<[1], [0], [0], [1], [0, 0, 1, 1], [], []>} : vector<16x16xbf16>, vector<16x8xbf16>, vector<16x8xf32> -> vector<16x8xf32>
    %cst_52 = arith.constant dense<0xFF800000> : vector<16xf32>
    %76 = vector.multi_reduction <maximumf>, %75, %cst_52 [1] : vector<16x8xf32> to vector<16xf32>
    %77 = vector.shape_cast %76 : vector<16xf32> to vector<16x1xf32>
    %78 = vector.broadcast %77 : vector<16x1xf32> to vector<16x8xf32>
    %79 = arith.subf %75, %78 : vector<16x8xf32>
    %80 = math.exp %79 : vector<16x8xf32>
    %cst_53 = arith.constant dense<0.000000e+00> : vector<16xf32>
    %81 = vector.multi_reduction <add>, %80, %cst_53 [1] : vector<16x8xf32> to vector<16xf32>
    %82 = vector.shape_cast %81 : vector<16xf32> to vector<16x1xf32>
    %83 = tpu.reciprocal %82 {approx = true} : vector<16x1xf32> -> vector<16x1xf32>
    %84 = vector.broadcast %83 : vector<16x1xf32> to vector<16x8xf32>
    %85 = arith.mulf %80, %84 : vector<16x8xf32>
    %86 = arith.truncf %85 : vector<16x8xf32> to vector<16x8xbf16>
    %cst_54 = arith.constant dense<0.000000e+00> : vector<16x16xf32>
    %87 = tpu.matmul %86, %74, %cst_54 {dimension_numbers = #tpu.dot_dimension_numbers<[1], [0], [0], [1], [0, 0, 1, 1], [], []>} : vector<16x8xbf16>, vector<8x16xbf16>, vector<16x16xf32> -> vector<16x16xf32>
    %c1_55 = arith.constant 1 : index
    %c0_56 = arith.constant 0 : index
    %c0_57 = arith.constant 0 : index
    %88 = vector.load %arg5[%c1_55, %c0_56, %c0_57] : memref<4x16x32xbf16, #tpu.memory_space<vmem>>, vector<1x16x32xbf16>
    %89 = vector.shape_cast %88 : vector<1x16x32xbf16> to vector<16x32xbf16>
    %c1_58 = arith.constant 1 : index
    %c0_59 = arith.constant 0 : index
    %c0_60 = arith.constant 0 : index
    %90 = vector.load %arg3[%c1_58, %c0_59, %c0_60] : memref<2x32x8xbf16, #tpu.memory_space<vmem>>, vector<1x32x8xbf16>
    %91 = vector.shape_cast %90 : vector<1x32x8xbf16> to vector<32x8xbf16>
    %cst_61 = arith.constant dense<0.000000e+00> : vector<16x8xf32>
    %92 = tpu.matmul %89, %91, %cst_61 {dimension_numbers = #tpu.dot_dimension_numbers<[1], [0], [0], [1], [0, 0, 1, 1], [], []>} : vector<16x32xbf16>, vector<32x8xbf16>, vector<16x8xf32> -> vector<16x8xf32>
    %93 = arith.truncf %92 : vector<16x8xf32> to vector<16x8xbf16>
    %94 = vector.extract_strided_slice %62 {offsets = [16, 0], sizes = [16, 16], strides = [1, 1]} : vector<32x16xbf16> to vector<16x16xbf16>
    %95 = vector.extract_strided_slice %66 {offsets = [8, 0], sizes = [8, 16], strides = [1, 1]} : vector<16x16xbf16> to vector<8x16xbf16>
    %cst_62 = arith.constant dense<0.000000e+00> : vector<16x8xf32>
    %96 = tpu.matmul %94, %93, %cst_62 {dimension_numbers = #tpu.dot_dimension_numbers<[1], [0], [0], [1], [0, 0, 1, 1], [], []>} : vector<16x16xbf16>, vector<16x8xbf16>, vector<16x8xf32> -> vector<16x8xf32>
    %cst_63 = arith.constant dense<0xFF800000> : vector<16xf32>
    %97 = vector.multi_reduction <maximumf>, %96, %cst_63 [1] : vector<16x8xf32> to vector<16xf32>
    %98 = vector.shape_cast %97 : vector<16xf32> to vector<16x1xf32>
    %99 = vector.broadcast %98 : vector<16x1xf32> to vector<16x8xf32>
    %100 = arith.subf %96, %99 : vector<16x8xf32>
    %101 = math.exp %100 : vector<16x8xf32>
    %cst_64 = arith.constant dense<0.000000e+00> : vector<16xf32>
    %102 = vector.multi_reduction <add>, %101, %cst_64 [1] : vector<16x8xf32> to vector<16xf32>
    %103 = vector.shape_cast %102 : vector<16xf32> to vector<16x1xf32>
    %104 = tpu.reciprocal %103 {approx = true} : vector<16x1xf32> -> vector<16x1xf32>
    %105 = vector.broadcast %104 : vector<16x1xf32> to vector<16x8xf32>
    %106 = arith.mulf %101, %105 : vector<16x8xf32>
    %107 = arith.truncf %106 : vector<16x8xf32> to vector<16x8xbf16>
    %cst_65 = arith.constant dense<0.000000e+00> : vector<16x16xf32>
    %108 = tpu.matmul %107, %95, %cst_65 {dimension_numbers = #tpu.dot_dimension_numbers<[1], [0], [0], [1], [0, 0, 1, 1], [], []>} : vector<16x8xbf16>, vector<8x16xbf16>, vector<16x16xf32> -> vector<16x16xf32>
    %109 = tpu.concatenate %87, %108 in 0 : vector<16x16xf32>, vector<16x16xf32> -> vector<32x16xf32>
    %110 = arith.truncf %109 : vector<32x16xf32> to vector<32x16xbf16>
    %c1_66 = arith.constant 1 : index
    %c0_67 = arith.constant 0 : index
    %c0_68 = arith.constant 0 : index
    %111 = vector.load %arg7[%c1_66, %c0_67, %c0_68] : memref<4x16x128xbf16, #tpu.memory_space<vmem>>, vector<1x16x128xbf16>
    %112 = vector.shape_cast %111 : vector<1x16x128xbf16> to vector<16x128xbf16>
    %cst_69 = arith.constant dense<0.000000e+00> : vector<32x128xf32>
    %113 = tpu.matmul %110, %112, %cst_69 {dimension_numbers = #tpu.dot_dimension_numbers<[1], [0], [0], [1], [0, 0, 1, 1], [], []>} : vector<32x16xbf16>, vector<16x128xbf16>, vector<32x128xf32> -> vector<32x128xf32>
    %114 = arith.addf %58, %113 : vector<32x128xf32>
    %c2 = arith.constant 2 : index
    %c0_70 = arith.constant 0 : index
    %c0_71 = arith.constant 0 : index
    %115 = vector.load %arg4[%c2, %c0_70, %c0_71] : memref<4x32x16xbf16, #tpu.memory_space<vmem>>, vector<1x32x16xbf16>
    %116 = vector.shape_cast %115 : vector<1x32x16xbf16> to vector<32x16xbf16>
    %cst_72 = arith.constant dense<0.000000e+00> : vector<32x16xf32>
    %117 = tpu.matmul %0, %116, %cst_72 {dimension_numbers = #tpu.dot_dimension_numbers<[1], [0], [0], [1], [0, 0, 1, 1], [], []>} : vector<32x32xbf16>, vector<32x16xbf16>, vector<32x16xf32> -> vector<32x16xf32>
    %118 = arith.truncf %117 : vector<32x16xf32> to vector<32x16xbf16>
    %c2_73 = arith.constant 2 : index
    %c0_74 = arith.constant 0 : index
    %c0_75 = arith.constant 0 : index
    %119 = vector.load %arg6[%c2_73, %c0_74, %c0_75] : memref<4x32x16xbf16, #tpu.memory_space<vmem>>, vector<1x32x16xbf16>
    %120 = vector.shape_cast %119 : vector<1x32x16xbf16> to vector<32x16xbf16>
    %cst_76 = arith.constant dense<0.000000e+00> : vector<16x16xf32>
    %121 = tpu.matmul %1, %120, %cst_76 {dimension_numbers = #tpu.dot_dimension_numbers<[1], [0], [0], [1], [0, 0, 1, 1], [], []>} : vector<16x32xbf16>, vector<32x16xbf16>, vector<16x16xf32> -> vector<16x16xf32>
    %122 = arith.truncf %121 : vector<16x16xf32> to vector<16x16xbf16>
    %c2_77 = arith.constant 2 : index
    %c0_78 = arith.constant 0 : index
    %c0_79 = arith.constant 0 : index
    %123 = vector.load %arg5[%c2_77, %c0_78, %c0_79] : memref<4x16x32xbf16, #tpu.memory_space<vmem>>, vector<1x16x32xbf16>
    %124 = vector.shape_cast %123 : vector<1x16x32xbf16> to vector<16x32xbf16>
    %c0_80 = arith.constant 0 : index
    %c0_81 = arith.constant 0 : index
    %c0_82 = arith.constant 0 : index
    %125 = vector.load %arg3[%c0_80, %c0_81, %c0_82] : memref<2x32x8xbf16, #tpu.memory_space<vmem>>, vector<1x32x8xbf16>
    %126 = vector.shape_cast %125 : vector<1x32x8xbf16> to vector<32x8xbf16>
    %cst_83 = arith.constant dense<0.000000e+00> : vector<16x8xf32>
    %127 = tpu.matmul %124, %126, %cst_83 {dimension_numbers = #tpu.dot_dimension_numbers<[1], [0], [0], [1], [0, 0, 1, 1], [], []>} : vector<16x32xbf16>, vector<32x8xbf16>, vector<16x8xf32> -> vector<16x8xf32>
    %128 = arith.truncf %127 : vector<16x8xf32> to vector<16x8xbf16>
    %129 = vector.extract_strided_slice %118 {offsets = [0, 0], sizes = [16, 16], strides = [1, 1]} : vector<32x16xbf16> to vector<16x16xbf16>
    %130 = vector.extract_strided_slice %122 {offsets = [0, 0], sizes = [8, 16], strides = [1, 1]} : vector<16x16xbf16> to vector<8x16xbf16>
    %cst_84 = arith.constant dense<0.000000e+00> : vector<16x8xf32>
    %131 = tpu.matmul %129, %128, %cst_84 {dimension_numbers = #tpu.dot_dimension_numbers<[1], [0], [0], [1], [0, 0, 1, 1], [], []>} : vector<16x16xbf16>, vector<16x8xbf16>, vector<16x8xf32> -> vector<16x8xf32>
    %cst_85 = arith.constant dense<0xFF800000> : vector<16xf32>
    %132 = vector.multi_reduction <maximumf>, %131, %cst_85 [1] : vector<16x8xf32> to vector<16xf32>
    %133 = vector.shape_cast %132 : vector<16xf32> to vector<16x1xf32>
    %134 = vector.broadcast %133 : vector<16x1xf32> to vector<16x8xf32>
    %135 = arith.subf %131, %134 : vector<16x8xf32>
    %136 = math.exp %135 : vector<16x8xf32>
    %cst_86 = arith.constant dense<0.000000e+00> : vector<16xf32>
    %137 = vector.multi_reduction <add>, %136, %cst_86 [1] : vector<16x8xf32> to vector<16xf32>
    %138 = vector.shape_cast %137 : vector<16xf32> to vector<16x1xf32>
    %139 = tpu.reciprocal %138 {approx = true} : vector<16x1xf32> -> vector<16x1xf32>
    %140 = vector.broadcast %139 : vector<16x1xf32> to vector<16x8xf32>
    %141 = arith.mulf %136, %140 : vector<16x8xf32>
    %142 = arith.truncf %141 : vector<16x8xf32> to vector<16x8xbf16>
    %cst_87 = arith.constant dense<0.000000e+00> : vector<16x16xf32>
    %143 = tpu.matmul %142, %130, %cst_87 {dimension_numbers = #tpu.dot_dimension_numbers<[1], [0], [0], [1], [0, 0, 1, 1], [], []>} : vector<16x8xbf16>, vector<8x16xbf16>, vector<16x16xf32> -> vector<16x16xf32>
    %c2_88 = arith.constant 2 : index
    %c0_89 = arith.constant 0 : index
    %c0_90 = arith.constant 0 : index
    %144 = vector.load %arg5[%c2_88, %c0_89, %c0_90] : memref<4x16x32xbf16, #tpu.memory_space<vmem>>, vector<1x16x32xbf16>
    %145 = vector.shape_cast %144 : vector<1x16x32xbf16> to vector<16x32xbf16>
    %c1_91 = arith.constant 1 : index
    %c0_92 = arith.constant 0 : index
    %c0_93 = arith.constant 0 : index
    %146 = vector.load %arg3[%c1_91, %c0_92, %c0_93] : memref<2x32x8xbf16, #tpu.memory_space<vmem>>, vector<1x32x8xbf16>
    %147 = vector.shape_cast %146 : vector<1x32x8xbf16> to vector<32x8xbf16>
    %cst_94 = arith.constant dense<0.000000e+00> : vector<16x8xf32>
    %148 = tpu.matmul %145, %147, %cst_94 {dimension_numbers = #tpu.dot_dimension_numbers<[1], [0], [0], [1], [0, 0, 1, 1], [], []>} : vector<16x32xbf16>, vector<32x8xbf16>, vector<16x8xf32> -> vector<16x8xf32>
    %149 = arith.truncf %148 : vector<16x8xf32> to vector<16x8xbf16>
    %150 = vector.extract_strided_slice %118 {offsets = [16, 0], sizes = [16, 16], strides = [1, 1]} : vector<32x16xbf16> to vector<16x16xbf16>
    %151 = vector.extract_strided_slice %122 {offsets = [8, 0], sizes = [8, 16], strides = [1, 1]} : vector<16x16xbf16> to vector<8x16xbf16>
    %cst_95 = arith.constant dense<0.000000e+00> : vector<16x8xf32>
    %152 = tpu.matmul %150, %149, %cst_95 {dimension_numbers = #tpu.dot_dimension_numbers<[1], [0], [0], [1], [0, 0, 1, 1], [], []>} : vector<16x16xbf16>, vector<16x8xbf16>, vector<16x8xf32> -> vector<16x8xf32>
    %cst_96 = arith.constant dense<0xFF800000> : vector<16xf32>
    %153 = vector.multi_reduction <maximumf>, %152, %cst_96 [1] : vector<16x8xf32> to vector<16xf32>
    %154 = vector.shape_cast %153 : vector<16xf32> to vector<16x1xf32>
    %155 = vector.broadcast %154 : vector<16x1xf32> to vector<16x8xf32>
    %156 = arith.subf %152, %155 : vector<16x8xf32>
    %157 = math.exp %156 : vector<16x8xf32>
    %cst_97 = arith.constant dense<0.000000e+00> : vector<16xf32>
    %158 = vector.multi_reduction <add>, %157, %cst_97 [1] : vector<16x8xf32> to vector<16xf32>
    %159 = vector.shape_cast %158 : vector<16xf32> to vector<16x1xf32>
    %160 = tpu.reciprocal %159 {approx = true} : vector<16x1xf32> -> vector<16x1xf32>
    %161 = vector.broadcast %160 : vector<16x1xf32> to vector<16x8xf32>
    %162 = arith.mulf %157, %161 : vector<16x8xf32>
    %163 = arith.truncf %162 : vector<16x8xf32> to vector<16x8xbf16>
    %cst_98 = arith.constant dense<0.000000e+00> : vector<16x16xf32>
    %164 = tpu.matmul %163, %151, %cst_98 {dimension_numbers = #tpu.dot_dimension_numbers<[1], [0], [0], [1], [0, 0, 1, 1], [], []>} : vector<16x8xbf16>, vector<8x16xbf16>, vector<16x16xf32> -> vector<16x16xf32>
    %165 = tpu.concatenate %143, %164 in 0 : vector<16x16xf32>, vector<16x16xf32> -> vector<32x16xf32>
    %166 = arith.truncf %165 : vector<32x16xf32> to vector<32x16xbf16>
    %c2_99 = arith.constant 2 : index
    %c0_100 = arith.constant 0 : index
    %c0_101 = arith.constant 0 : index
    %167 = vector.load %arg7[%c2_99, %c0_100, %c0_101] : memref<4x16x128xbf16, #tpu.memory_space<vmem>>, vector<1x16x128xbf16>
    %168 = vector.shape_cast %167 : vector<1x16x128xbf16> to vector<16x128xbf16>
    %cst_102 = arith.constant dense<0.000000e+00> : vector<32x128xf32>
    %169 = tpu.matmul %166, %168, %cst_102 {dimension_numbers = #tpu.dot_dimension_numbers<[1], [0], [0], [1], [0, 0, 1, 1], [], []>} : vector<32x16xbf16>, vector<16x128xbf16>, vector<32x128xf32> -> vector<32x128xf32>
    %170 = arith.addf %114, %169 : vector<32x128xf32>
    %c3 = arith.constant 3 : index
    %c0_103 = arith.constant 0 : index
    %c0_104 = arith.constant 0 : index
    %171 = vector.load %arg4[%c3, %c0_103, %c0_104] : memref<4x32x16xbf16, #tpu.memory_space<vmem>>, vector<1x32x16xbf16>
    %172 = vector.shape_cast %171 : vector<1x32x16xbf16> to vector<32x16xbf16>
    %cst_105 = arith.constant dense<0.000000e+00> : vector<32x16xf32>
    %173 = tpu.matmul %0, %172, %cst_105 {dimension_numbers = #tpu.dot_dimension_numbers<[1], [0], [0], [1], [0, 0, 1, 1], [], []>} : vector<32x32xbf16>, vector<32x16xbf16>, vector<32x16xf32> -> vector<32x16xf32>
    %174 = arith.truncf %173 : vector<32x16xf32> to vector<32x16xbf16>
    %c3_106 = arith.constant 3 : index
    %c0_107 = arith.constant 0 : index
    %c0_108 = arith.constant 0 : index
    %175 = vector.load %arg6[%c3_106, %c0_107, %c0_108] : memref<4x32x16xbf16, #tpu.memory_space<vmem>>, vector<1x32x16xbf16>
    %176 = vector.shape_cast %175 : vector<1x32x16xbf16> to vector<32x16xbf16>
    %cst_109 = arith.constant dense<0.000000e+00> : vector<16x16xf32>
    %177 = tpu.matmul %1, %176, %cst_109 {dimension_numbers = #tpu.dot_dimension_numbers<[1], [0], [0], [1], [0, 0, 1, 1], [], []>} : vector<16x32xbf16>, vector<32x16xbf16>, vector<16x16xf32> -> vector<16x16xf32>
    %178 = arith.truncf %177 : vector<16x16xf32> to vector<16x16xbf16>
    %c3_110 = arith.constant 3 : index
    %c0_111 = arith.constant 0 : index
    %c0_112 = arith.constant 0 : index
    %179 = vector.load %arg5[%c3_110, %c0_111, %c0_112] : memref<4x16x32xbf16, #tpu.memory_space<vmem>>, vector<1x16x32xbf16>
    %180 = vector.shape_cast %179 : vector<1x16x32xbf16> to vector<16x32xbf16>
    %c0_113 = arith.constant 0 : index
    %c0_114 = arith.constant 0 : index
    %c0_115 = arith.constant 0 : index
    %181 = vector.load %arg3[%c0_113, %c0_114, %c0_115] : memref<2x32x8xbf16, #tpu.memory_space<vmem>>, vector<1x32x8xbf16>
    %182 = vector.shape_cast %181 : vector<1x32x8xbf16> to vector<32x8xbf16>
    %cst_116 = arith.constant dense<0.000000e+00> : vector<16x8xf32>
    %183 = tpu.matmul %180, %182, %cst_116 {dimension_numbers = #tpu.dot_dimension_numbers<[1], [0], [0], [1], [0, 0, 1, 1], [], []>} : vector<16x32xbf16>, vector<32x8xbf16>, vector<16x8xf32> -> vector<16x8xf32>
    %184 = arith.truncf %183 : vector<16x8xf32> to vector<16x8xbf16>
    %185 = vector.extract_strided_slice %174 {offsets = [0, 0], sizes = [16, 16], strides = [1, 1]} : vector<32x16xbf16> to vector<16x16xbf16>
    %186 = vector.extract_strided_slice %178 {offsets = [0, 0], sizes = [8, 16], strides = [1, 1]} : vector<16x16xbf16> to vector<8x16xbf16>
    %cst_117 = arith.constant dense<0.000000e+00> : vector<16x8xf32>
    %187 = tpu.matmul %185, %184, %cst_117 {dimension_numbers = #tpu.dot_dimension_numbers<[1], [0], [0], [1], [0, 0, 1, 1], [], []>} : vector<16x16xbf16>, vector<16x8xbf16>, vector<16x8xf32> -> vector<16x8xf32>
    %cst_118 = arith.constant dense<0xFF800000> : vector<16xf32>
    %188 = vector.multi_reduction <maximumf>, %187, %cst_118 [1] : vector<16x8xf32> to vector<16xf32>
    %189 = vector.shape_cast %188 : vector<16xf32> to vector<16x1xf32>
    %190 = vector.broadcast %189 : vector<16x1xf32> to vector<16x8xf32>
    %191 = arith.subf %187, %190 : vector<16x8xf32>
    %192 = math.exp %191 : vector<16x8xf32>
    %cst_119 = arith.constant dense<0.000000e+00> : vector<16xf32>
    %193 = vector.multi_reduction <add>, %192, %cst_119 [1] : vector<16x8xf32> to vector<16xf32>
    %194 = vector.shape_cast %193 : vector<16xf32> to vector<16x1xf32>
    %195 = tpu.reciprocal %194 {approx = true} : vector<16x1xf32> -> vector<16x1xf32>
    %196 = vector.broadcast %195 : vector<16x1xf32> to vector<16x8xf32>
    %197 = arith.mulf %192, %196 : vector<16x8xf32>
    %198 = arith.truncf %197 : vector<16x8xf32> to vector<16x8xbf16>
    %cst_120 = arith.constant dense<0.000000e+00> : vector<16x16xf32>
    %199 = tpu.matmul %198, %186, %cst_120 {dimension_numbers = #tpu.dot_dimension_numbers<[1], [0], [0], [1], [0, 0, 1, 1], [], []>} : vector<16x8xbf16>, vector<8x16xbf16>, vector<16x16xf32> -> vector<16x16xf32>
    %c3_121 = arith.constant 3 : index
    %c0_122 = arith.constant 0 : index
    %c0_123 = arith.constant 0 : index
    %200 = vector.load %arg5[%c3_121, %c0_122, %c0_123] : memref<4x16x32xbf16, #tpu.memory_space<vmem>>, vector<1x16x32xbf16>
    %201 = vector.shape_cast %200 : vector<1x16x32xbf16> to vector<16x32xbf16>
    %c1_124 = arith.constant 1 : index
    %c0_125 = arith.constant 0 : index
    %c0_126 = arith.constant 0 : index
    %202 = vector.load %arg3[%c1_124, %c0_125, %c0_126] : memref<2x32x8xbf16, #tpu.memory_space<vmem>>, vector<1x32x8xbf16>
    %203 = vector.shape_cast %202 : vector<1x32x8xbf16> to vector<32x8xbf16>
    %cst_127 = arith.constant dense<0.000000e+00> : vector<16x8xf32>
    %204 = tpu.matmul %201, %203, %cst_127 {dimension_numbers = #tpu.dot_dimension_numbers<[1], [0], [0], [1], [0, 0, 1, 1], [], []>} : vector<16x32xbf16>, vector<32x8xbf16>, vector<16x8xf32> -> vector<16x8xf32>
    %205 = arith.truncf %204 : vector<16x8xf32> to vector<16x8xbf16>
    %206 = vector.extract_strided_slice %174 {offsets = [16, 0], sizes = [16, 16], strides = [1, 1]} : vector<32x16xbf16> to vector<16x16xbf16>
    %207 = vector.extract_strided_slice %178 {offsets = [8, 0], sizes = [8, 16], strides = [1, 1]} : vector<16x16xbf16> to vector<8x16xbf16>
    %cst_128 = arith.constant dense<0.000000e+00> : vector<16x8xf32>
    %208 = tpu.matmul %206, %205, %cst_128 {dimension_numbers = #tpu.dot_dimension_numbers<[1], [0], [0], [1], [0, 0, 1, 1], [], []>} : vector<16x16xbf16>, vector<16x8xbf16>, vector<16x8xf32> -> vector<16x8xf32>
    %cst_129 = arith.constant dense<0xFF800000> : vector<16xf32>
    %209 = vector.multi_reduction <maximumf>, %208, %cst_129 [1] : vector<16x8xf32> to vector<16xf32>
    %210 = vector.shape_cast %209 : vector<16xf32> to vector<16x1xf32>
    %211 = vector.broadcast %210 : vector<16x1xf32> to vector<16x8xf32>
    %212 = arith.subf %208, %211 : vector<16x8xf32>
    %213 = math.exp %212 : vector<16x8xf32>
    %cst_130 = arith.constant dense<0.000000e+00> : vector<16xf32>
    %214 = vector.multi_reduction <add>, %213, %cst_130 [1] : vector<16x8xf32> to vector<16xf32>
    %215 = vector.shape_cast %214 : vector<16xf32> to vector<16x1xf32>
    %216 = tpu.reciprocal %215 {approx = true} : vector<16x1xf32> -> vector<16x1xf32>
    %217 = vector.broadcast %216 : vector<16x1xf32> to vector<16x8xf32>
    %218 = arith.mulf %213, %217 : vector<16x8xf32>
    %219 = arith.truncf %218 : vector<16x8xf32> to vector<16x8xbf16>
    %cst_131 = arith.constant dense<0.000000e+00> : vector<16x16xf32>
    %220 = tpu.matmul %219, %207, %cst_131 {dimension_numbers = #tpu.dot_dimension_numbers<[1], [0], [0], [1], [0, 0, 1, 1], [], []>} : vector<16x8xbf16>, vector<8x16xbf16>, vector<16x16xf32> -> vector<16x16xf32>
    %221 = tpu.concatenate %199, %220 in 0 : vector<16x16xf32>, vector<16x16xf32> -> vector<32x16xf32>
    %222 = arith.truncf %221 : vector<32x16xf32> to vector<32x16xbf16>
    %c3_132 = arith.constant 3 : index
    %c0_133 = arith.constant 0 : index
    %c0_134 = arith.constant 0 : index
    %223 = vector.load %arg7[%c3_132, %c0_133, %c0_134] : memref<4x16x128xbf16, #tpu.memory_space<vmem>>, vector<1x16x128xbf16>
    %224 = vector.shape_cast %223 : vector<1x16x128xbf16> to vector<16x128xbf16>
    %cst_135 = arith.constant dense<0.000000e+00> : vector<32x128xf32>
    %225 = tpu.matmul %222, %224, %cst_135 {dimension_numbers = #tpu.dot_dimension_numbers<[1], [0], [0], [1], [0, 0, 1, 1], [], []>} : vector<32x16xbf16>, vector<16x128xbf16>, vector<32x128xf32> -> vector<32x128xf32>
    %226 = arith.addf %170, %225 : vector<32x128xf32>
    %c0_136 = arith.constant 0 : index
    %c0_137 = arith.constant 0 : index
    %227 = vector.load %arg8[%c0_136, %c0_137] : memref<1x128xf32, #tpu.memory_space<vmem>>, vector<1x128xf32>
    %228 = vector.broadcast %227 : vector<1x128xf32> to vector<32x128xf32>
    %229 = arith.addf %226, %228 : vector<32x128xf32>
    %c0_138 = arith.constant 0 : index
    %c0_139 = arith.constant 0 : index
    %230 = vector.load %arg9[%c0_138, %c0_139] : memref<32x128xf32, #tpu.memory_space<vmem>>, vector<32x128xf32>
    tpu.vector_store %arg9[%c0_138, %c0_139], %229 {strides = array<i32>} : memref<32x128xf32, #tpu.memory_space<vmem>>, vector<32x128xf32>,
    return
  }
  func.func @transform_0(%arg0: i32) -> (i32, i32) {
    %c0_i32 = arith.constant 0 : i32
    %c0_i32_0 = arith.constant 0 : i32
    return %arg0, %c0_i32 : i32, i32
  }
  func.func @transform_1(%arg0: i32) -> (i32, i32) {
    %c0_i32 = arith.constant 0 : i32
    %c0_i32_0 = arith.constant 0 : i32
    return %arg0, %c0_i32 : i32, i32
  }
  func.func @transform_2(%arg0: i32) -> (i32, i32, i32) {
    %c0_i32 = arith.constant 0 : i32
    %c0_i32_0 = arith.constant 0 : i32
    %c0_i32_1 = arith.constant 0 : i32
    return %arg0, %c0_i32, %c0_i32_0 : i32, i32, i32
  }
  func.func @transform_3(%arg0: i32) -> (i32, i32, i32) {
    %c0_i32 = arith.constant 0 : i32
    %c0_i32_0 = arith.constant 0 : i32
    %c0_i32_1 = arith.constant 0 : i32
    %c0_i32_2 = arith.constant 0 : i32
    return %c0_i32, %c0_i32_0, %c0_i32_1 : i32, i32, i32
  }
  func.func @transform_4(%arg0: i32) -> (i32, i32, i32) {
    %c0_i32 = arith.constant 0 : i32
    %c0_i32_0 = arith.constant 0 : i32
    %c0_i32_1 = arith.constant 0 : i32
    %c0_i32_2 = arith.constant 0 : i32
    return %c0_i32, %c0_i32_0, %c0_i32_1 : i32, i32, i32
  }
  func.func @transform_5(%arg0: i32) -> (i32, i32, i32) {
    %c0_i32 = arith.constant 0 : i32
    %c0_i32_0 = arith.constant 0 : i32
    %c0_i32_1 = arith.constant 0 : i32
    %c0_i32_2 = arith.constant 0 : i32
    return %c0_i32, %c0_i32_0, %c0_i32_1 : i32, i32, i32
  }
  func.func @transform_6(%arg0: i32) -> (i32, i32, i32) {
    %c0_i32 = arith.constant 0 : i32
    %c0_i32_0 = arith.constant 0 : i32
    %c0_i32_1 = arith.constant 0 : i32
    %c0_i32_2 = arith.constant 0 : i32
    return %c0_i32, %c0_i32_0, %c0_i32_1 : i32, i32, i32
  }
  func.func @transform_7(%arg0: i32) -> (i32, i32) {
    %c0_i32 = arith.constant 0 : i32
    %c0_i32_0 = arith.constant 0 : i32
    %c0_i32_1 = arith.constant 0 : i32
    return %c0_i32, %c0_i32_0 : i32, i32
  }
  func.func @transform_8(%arg0: i32) -> (i32, i32) {
    %c0_i32 = arith.constant 0 : i32
    %c0_i32_0 = arith.constant 0 : i32
    return %arg0, %c0_i32 : i32, i32
  }
}

</mosaic_0001>

<llo_original>
// kernel: tpu_custom_call.1
$region0: #{tpu_custom_call.1}
  #allocation0 [shape = 'u32[]', space=smem, size = 0x4, offset = 0x4, fixed_abs, tag = 'smem constant byte address 0x4 - core index']
  #allocation1 [shape = 'u32[72,128]{1,0:T(1,128)}', space=vmem, size = 0x9000, scoped, tag = 'internal scratch']
  %s0 = inlined_call_operand.vmem [shape: bf16[32,32], index: 0, kind: input, shape index: {}]
  %s1 = inlined_call_operand.vmem [shape: bf16[16,32], index: 1, kind: input, shape index: {}]
  %s2 = inlined_call_operand.vmem [shape: bf16[2,32,8], index: 2, kind: input, shape index: {}]
  %s3 = inlined_call_operand.vmem [shape: bf16[4,32,16], index: 3, kind: input, shape index: {}]
  %s4 = inlined_call_operand.vmem [shape: bf16[4,16,32], index: 4, kind: input, shape index: {}]
  %s5 = inlined_call_operand.vmem [shape: bf16[4,32,16], index: 5, kind: input, shape index: {}]
  %s6 = inlined_call_operand.vmem [shape: bf16[4,16,128], index: 6, kind: input, shape index: {}]
  %s7 = inlined_call_operand.vmem [shape: f32[1,128], index: 7, kind: input, shape index: {}]
  %s8 = inlined_call_operand.hbm [shape: f32[32,128], index: 8, kind: output, shape index: {}]
  %s9 = sld [smem:[#allocation0]]
  $region42: #{tpu_custom_call.1} parent=0
    _
  %s11 = ssub.s32 1, %s9
  %s12 = scalar_select 0, %s11, %s9
  $region1: #{tpu_custom_call.1} parent=0
    #allocation2 [shape = 'u8[16384]{0}', space=vmem, size = 0x4000, scoped, tag = 'output window, operand 0, single buffered']
    #allocation3 [shape = 's32[1]{0}', space=sflag, size = 0x4, scoped, tag = 'scoped memory for tpu_custom_call.1']
    %13 = vsyncpa [#allocation3], 0
    // Predicated region
    $region2: #{tpu_custom_call.1} parent=1 // pred_check
      _
    $region3: #{tpu_custom_call.1} parent=1 // pred_check_branch
      %15 = sbr.rel (0) target = $region5
    $region4: #{tpu_custom_call.1} parent=1 // pred_region
      _
    $region5: #{tpu_custom_call.1} parent=1 // pred_fallthru
      _
    // Predicated region
    $region6: #{tpu_custom_call.1} parent=1 // pred_check
      _
    $region7: #{tpu_custom_call.1} parent=1 // pred_check_branch
      %17 = sbr.rel (0) target = $region9
    $region8: #{tpu_custom_call.1} parent=1 // pred_region
      _
    $region9: #{tpu_custom_call.1} parent=1 // pred_fallthru
      _
    // Predicated region
    $region10: #{tpu_custom_call.1} parent=1 // pred_check
      _
    $region11: #{tpu_custom_call.1} parent=1 // pred_check_branch
      %19 = sbr.rel (0) target = $region13
    $region12: #{tpu_custom_call.1} parent=1 // pred_region
      _
    $region13: #{tpu_custom_call.1} parent=1 // pred_fallthru
      _
    // Predicated region
    $region14: #{tpu_custom_call.1} parent=1 // pred_check
      _
    $region15: #{tpu_custom_call.1} parent=1 // pred_check_branch
      %21 = sbr.rel (0) target = $region17
    $region16: #{tpu_custom_call.1} parent=1 // pred_region
      _
    $region17: #{tpu_custom_call.1} parent=1 // pred_fallthru
      _
    // Predicated region
    $region18: #{tpu_custom_call.1} parent=1 // pred_check
      _
    $region19: #{tpu_custom_call.1} parent=1 // pred_check_branch
      %23 = sbr.rel (0) target = $region21
    $region20: #{tpu_custom_call.1} parent=1 // pred_region
      _
    $region21: #{tpu_custom_call.1} parent=1 // pred_fallthru
      _
    // Predicated region
    $region22: #{tpu_custom_call.1} parent=1 // pred_check
      _
    $region23: #{tpu_custom_call.1} parent=1 // pred_check_branch
      %25 = sbr.rel (0) target = $region25
    $region24: #{tpu_custom_call.1} parent=1 // pred_region
      _
    $region25: #{tpu_custom_call.1} parent=1 // pred_fallthru
      _
    // Predicated region
    $region26: #{tpu_custom_call.1} parent=1 // pred_check
      _
    $region27: #{tpu_custom_call.1} parent=1 // pred_check_branch
      %27 = sbr.rel (0) target = $region29
    $region28: #{tpu_custom_call.1} parent=1 // pred_region
      _
    $region29: #{tpu_custom_call.1} parent=1 // pred_fallthru
      _
    // Predicated region
    $region30: #{tpu_custom_call.1} parent=1 // pred_check
      _
    $region31: #{tpu_custom_call.1} parent=1 // pred_check_branch
      %29 = sbr.rel (0) target = $region33
    $region32: #{tpu_custom_call.1} parent=1 // pred_region
      _
    $region33: #{tpu_custom_call.1} parent=1 // pred_fallthru
      _
    %v31 = vld [vmem:[%s0] sm:$0xf]
    %v32 = vld [vmem:[%s0 + $0x4] sm:$0xf]
    %v33 = vld [vmem:[%s0 + $0x8] sm:$0xf]
    %v34 = vld [vmem:[%s0 + $0xc] sm:$0xf]
    %v35 = vld [vmem:[%s1] sm:$0xf]
    %v36 = vld [vmem:[%s1 + $0x4] sm:$0xf]
    %v37 = vld [vmem:[%s3] sm:$0xf]
    %v38 = vld [vmem:[%s3 + $0x4] sm:$0xf]
    %v39 = vld [vmem:[%s3 + $0x8] sm:$0xf]
    %v40 = vld [vmem:[%s3 + $0xc] sm:$0xf]
    %v45 = vunpack.c.l.b16 %v31
    %v46 = vunpack.c.l.b16 %v32
    %v47 = vunpack.c.l.b16 %v33
    %v48 = vunpack.c.l.b16 %v34
    %v49 = vpack.c.b16 %v46, %v45
    %v50 = vpack.c.b16 %v48, %v47
    %v55 = vunpack.c.l.b16 %v37
    %v56 = vunpack.c.l.b16 %v38
    %v57 = vunpack.c.l.b16 %v39
    %v58 = vunpack.c.l.b16 %v40
    %v59 = vpack.c.b16 %v56, %v55
    %v60 = vpack.c.b16 %v58, %v57
    %vm63 = vcmask 261120
    %v65 = vsel %vm63, %v49, 0
    %v68 = vsel %vm63, %v50, 0
    %70 = vmatpush.bf16.msra.mxu0 0
    %71 = vmatpush.bf16.msra.mxu0 0
    %72 = vmatpush.bf16.msra.mxu0 0
    %73 = vmatpush.bf16.msra.mxu0 0
    %74 = vmatpush.bf16.msra.mxu0 0
    %75 = vmatpush.bf16.msra.mxu0 0
    %76 = vmatpush.bf16.msra.mxu0 %v60
    %77 = vmatpush.bf16.msra.mxu0 %v59
    %78 = vmatmul.bf16.gmra.mxu0 %v65
    %v79 = vpop.f32.mrf.mxu0
    %v80 = vadd.f32 0.0, %v79
    %v81 = vpop.f32.mrf.mxu0
    %v82 = vadd.f32 0.0, %v81
    %83 = vmatmul.bf16.gmra.mxu0 %v68
    %v84 = vpop.f32.mrf.mxu0
    %v85 = vadd.f32 0.0, %v84
    %v86 = vpop.f32.mrf.mxu0
    %v87 = vadd.f32 0.0, %v86
    %88 = vdwg.mxu0
    %v89 = vpack.c.bf16 %v80, %v80
    %v90 = vpack.c.bf16 %v82, %v82
    %v91 = vpack.c.bf16 %v85, %v85
    %v92 = vpack.c.bf16 %v87, %v87
    %v93 = vld [vmem:[%s5] sm:$0xf]
    %v94 = vld [vmem:[%s5 + $0x4] sm:$0xf]
    %v95 = vld [vmem:[%s5 + $0x8] sm:$0xf]
    %v96 = vld [vmem:[%s5 + $0xc] sm:$0xf]
    %v99 = vunpack.c.l.b16 %v35
    %v100 = vunpack.c.l.b16 %v36
    %v101 = vpack.c.b16 %v100, %v99
    %v106 = vunpack.c.l.b16 %v93
    %v107 = vunpack.c.l.b16 %v94
    %v108 = vunpack.c.l.b16 %v95
    %v109 = vunpack.c.l.b16 %v96
    %v110 = vpack.c.b16 %v107, %v106
    %v111 = vpack.c.b16 %v109, %v108
    %v115 = vsel %vm63, %v101, 0
    %117 = vmatpush.bf16.msra.mxu0 0
    %118 = vmatpush.bf16.msra.mxu0 0
    %119 = vmatpush.bf16.msra.mxu0 0
    %120 = vmatpush.bf16.msra.mxu0 0
    %121 = vmatpush.bf16.msra.mxu0 0
    %122 = vmatpush.bf16.msra.mxu0 0
    %123 = vmatpush.bf16.msra.mxu0 %v111
    %124 = vmatpush.bf16.msra.mxu0 %v110
    %125 = vmatmul.bf16.gmra.mxu0 %v115
    %v126 = vpop.f32.mrf.mxu0
    %v127 = vadd.f32 0.0, %v126
    %v128 = vpop.f32.mrf.mxu0
    %v129 = vadd.f32 0.0, %v128
    %130 = vdwg.mxu0
    %v131 = vpack.c.bf16 %v127, %v127
    %v132 = vpack.c.bf16 %v129, %v129
    %v133 = vld [vmem:[%s4] sm:$0xf]
    %v134 = vld [vmem:[%s4 + $0x4] sm:$0xf]
    %v135 = vld [vmem:[%s2] sm:$0xf]
    %v136 = vld [vmem:[%s2 + $0x4] sm:$0xf]
    %v137 = vld [vmem:[%s2 + $0x8] sm:$0xf]
    %v138 = vld [vmem:[%s2 + $0xc] sm:$0xf]
    %v141 = vunpack.c.l.b16 %v133
    %v142 = vunpack.c.l.b16 %v134
    %v143 = vpack.c.b16 %v142, %v141
    %v148 = vunpack.c.l.b16 %v135
    %v149 = vunpack.c.l.b16 %v136
    %v150 = vunpack.c.l.b16 %v137
    %v151 = vunpack.c.l.b16 %v138
    %v152 = vpack.c.b16 %v149, %v148
    %v153 = vpack.c.b16 %v151, %v150
    %v157 = vsel %vm63, %v143, 0
    %159 = vmatpush.bf16.msra.mxu0 0
    %160 = vmatpush.bf16.msra.mxu0 0
    %161 = vmatpush.bf16.msra.mxu0 0
    %162 = vmatpush.bf16.msra.mxu0 0
    %163 = vmatpush.bf16.msra.mxu0 0
    %164 = vmatpush.bf16.msra.mxu0 0
    %165 = vmatpush.bf16.msra.mxu0 %v153
    %166 = vmatpush.bf16.msra.mxu0 %v152
    %167 = vmatmul.bf16.gmra.mxu0 %v157
    %v168 = vpop.f32.mrf.mxu0
    %v169 = vadd.f32 0.0, %v168
    %v170 = vpop.f32.mrf.mxu0
    %v171 = vadd.f32 0.0, %v170
    %172 = vdwg.mxu0
    %v173 = vpack.c.bf16 %v171, %v169
    %v176 = vunpack.c.l.b16 %v89
    %v177 = vunpack.c.l.b16 %v90
    %v178 = vpack.c.b16 %v177, %v176
    %vm179 = vcmask 130048
    %v181 = vsel %vm179, %v178, 0
    %183 = vmatpush.bf16.msra.mxu0 0
    %184 = vmatpush.bf16.msra.mxu0 0
    %185 = vmatpush.bf16.msra.mxu0 0
    %186 = vmatpush.bf16.msra.mxu0 0
    %187 = vmatpush.bf16.msra.mxu0 0
    %188 = vmatpush.bf16.msra.mxu0 0
    %189 = vmatpush.bf16.msra.mxu0 0
    %190 = vmatpush.bf16.msra.mxu0 %v173
    %191 = vmatmul.bf16.gmra.mxu0 %v181
    %v192 = vpop.f32.mrf.mxu0
    %v193 = vadd.f32 0.0, %v192
    %v194 = vpop.f32.mrf.mxu0
    %v195 = vadd.f32 0.0, %v194
    %196 = vdwg.mxu0
    %vm197 = vcmask 64512
    %v198 = vsel %vm197, %v193, -inf
    %199 = vmax.xlane.f32.xlu0 %v198
    %v200 = vpop.xlane.xlu0 %199
    %v201 = vsel %vm197, %v195, -inf
    %202 = vmax.xlane.f32.xlu0 %v201
    %v203 = vpop.xlane.xlu0 %202
    %v204 = vsub.f32 %v193, %v200
    %v205 = vsub.f32 %v195, %v203
    %v206 = vmul.f32 %v204, 1.442695
    %v207 = vpow.pop %v206
    %v208 = vmul.f32 %v205, 1.442695
    %v209 = vpow.pop %v208
    %v210 = vsel %vm197, %v207, 0.0
    %211 = vadd.xlane.f32.xlu0 %v210
    %v212 = vpop.xlane.xlu0 %211
    %v213 = vsel %vm197, %v209, 0.0
    %214 = vadd.xlane.f32.xlu0 %v213
    %v215 = vpop.xlane.xlu0 %214
    %v216 = vrcp.pop %v212
    %v217 = vrcp.pop %v215
    %v218 = vmul.f32 %v207, %v216
    %v219 = vmul.f32 %v209, %v217
    %v220 = vpack.c.bf16 %v219, %v218
    %v222 = vsel %vm197, %v220, 0
    %vm224 = vcmask 1043456
    %v226 = vsel %vm224, %v131, 0
    %228 = vmatpush.bf16.msra.mxu0 0
    %229 = vmatpush.bf16.msra.mxu0 0
    %230 = vmatpush.bf16.msra.mxu0 0
    %231 = vmatpush.bf16.msra.mxu0 0
    %232 = vmatpush.bf16.msra.mxu0 0
    %233 = vmatpush.bf16.msra.mxu0 0
    %234 = vmatpush.bf16.msra.mxu0 0
    %235 = vmatpush.bf16.msra.mxu0 %v226
    %236 = vmatmul.bf16.gmra.mxu0 %v222
    %v237 = vpop.f32.mrf.mxu0
    %v238 = vadd.f32 0.0, %v237
    %v239 = vpop.f32.mrf.mxu0
    %v240 = vadd.f32 0.0, %v239
    %241 = vdwg.mxu0
    %s242 = scalar_lea.vmem %s2, 16
    %v243 = vld [vmem:[%s242] sm:$0xf]
    %v244 = vld [vmem:[%s242 + $0x4] sm:$0xf]
    %v245 = vld [vmem:[%s242 + $0x8] sm:$0xf]
    %v246 = vld [vmem:[%s242 + $0xc] sm:$0xf]
    %v251 = vunpack.c.l.b16 %v243
    %v252 = vunpack.c.l.b16 %v244
    %v253 = vunpack.c.l.b16 %v245
    %v254 = vunpack.c.l.b16 %v246
    %v255 = vpack.c.b16 %v252, %v251
    %v256 = vpack.c.b16 %v254, %v253
    %259 = vmatpush.bf16.msra.mxu0 0
    %260 = vmatpush.bf16.msra.mxu0 0
    %261 = vmatpush.bf16.msra.mxu0 0
    %262 = vmatpush.bf16.msra.mxu0 0
    %263 = vmatpush.bf16.msra.mxu0 0
    %264 = vmatpush.bf16.msra.mxu0 0
    %265 = vmatpush.bf16.msra.mxu0 %v256
    %266 = vmatpush.bf16.msra.mxu0 %v255
    %267 = vmatmul.bf16.gmra.mxu0 %v157
    %v268 = vpop.f32.mrf.mxu0
    %v269 = vadd.f32 0.0, %v268
    %v270 = vpop.f32.mrf.mxu0
    %v271 = vadd.f32 0.0, %v270
    %272 = vdwg.mxu0
    %v273 = vpack.c.bf16 %v271, %v269
    %v276 = vunpack.c.l.b16 %v91
    %v277 = vunpack.c.l.b16 %v92
    %v278 = vpack.c.b16 %v277, %v276
    %v280 = vsel %vm179, %v278, 0
    %282 = vmatpush.bf16.msra.mxu0 0
    %283 = vmatpush.bf16.msra.mxu0 0
    %284 = vmatpush.bf16.msra.mxu0 0
    %285 = vmatpush.bf16.msra.mxu0 0
    %286 = vmatpush.bf16.msra.mxu0 0
    %287 = vmatpush.bf16.msra.mxu0 0
    %288 = vmatpush.bf16.msra.mxu0 0
    %289 = vmatpush.bf16.msra.mxu0 %v273
    %290 = vmatmul.bf16.gmra.mxu0 %v280
    %v291 = vpop.f32.mrf.mxu0
    %v292 = vadd.f32 0.0, %v291
    %v293 = vpop.f32.mrf.mxu0
    %v294 = vadd.f32 0.0, %v293
    %295 = vdwg.mxu0
    %v296 = vsel %vm197, %v292, -inf
    %297 = vmax.xlane.f32.xlu0 %v296
    %v298 = vpop.xlane.xlu0 %297
    %v299 = vsel %vm197, %v294, -inf
    %300 = vmax.xlane.f32.xlu0 %v299
    %v301 = vpop.xlane.xlu0 %300
    %v302 = vsub.f32 %v292, %v298
    %v303 = vsub.f32 %v294, %v301
    %v304 = vmul.f32 %v302, 1.442695
    %v305 = vpow.pop %v304
    %v306 = vmul.f32 %v303, 1.442695
    %v307 = vpow.pop %v306
    %v308 = vsel %vm197, %v305, 0.0
    %309 = vadd.xlane.f32.xlu0 %v308
    %v310 = vpop.xlane.xlu0 %309
    %v311 = vsel %vm197, %v307, 0.0
    %312 = vadd.xlane.f32.xlu0 %v311
    %v313 = vpop.xlane.xlu0 %312
    %v314 = vrcp.pop %v310
    %v315 = vrcp.pop %v313
    %v316 = vmul.f32 %v305, %v314
    %v317 = vmul.f32 %v307, %v315
    %v318 = vpack.c.bf16 %v317, %v316
    %v320 = vsel %vm197, %v318, 0
    %v323 = vsel %vm224, %v132, 0
    %325 = vmatpush.bf16.msra.mxu0 0
    %326 = vmatpush.bf16.msra.mxu0 0
    %327 = vmatpush.bf16.msra.mxu0 0
    %328 = vmatpush.bf16.msra.mxu0 0
    %329 = vmatpush.bf16.msra.mxu0 0
    %330 = vmatpush.bf16.msra.mxu0 0
    %331 = vmatpush.bf16.msra.mxu0 0
    %332 = vmatpush.bf16.msra.mxu0 %v323
    %333 = vmatmul.bf16.gmra.mxu0 %v320
    %v334 = vpop.f32.mrf.mxu0
    %v335 = vadd.f32 0.0, %v334
    %v336 = vpop.f32.mrf.mxu0
    %v337 = vadd.f32 0.0, %v336
    %338 = vdwg.mxu0
    %v339 = vpack.c.bf16 %v240, %v238
    %v340 = vpack.c.bf16 %v337, %v335
    %v341 = vld [vmem:[%s6] sm:$0xf]
    %v342 = vld [vmem:[%s6 + $0x4] sm:$0xf]
    %s343 = scalar_lea.vmem %s3, 16
    %v344 = vld [vmem:[%s343] sm:$0xf]
    %v345 = vld [vmem:[%s343 + $0x4] sm:$0xf]
    %v346 = vld [vmem:[%s343 + $0x8] sm:$0xf]
    %v347 = vld [vmem:[%s343 + $0xc] sm:$0xf]
    %v352 = vunpack.c.l.b16 %v344
    %v353 = vunpack.c.l.b16 %v345
    %v354 = vunpack.c.l.b16 %v346
    %v355 = vunpack.c.l.b16 %v347
    %v356 = vpack.c.b16 %v353, %v352
    %v357 = vpack.c.b16 %v355, %v354
    %360 = vmatpush.bf16.msra.mxu0 0
    %361 = vmatpush.bf16.msra.mxu0 0
    %362 = vmatpush.bf16.msra.mxu0 0
    %363 = vmatpush.bf16.msra.mxu0 0
    %364 = vmatpush.bf16.msra.mxu0 0
    %365 = vmatpush.bf16.msra.mxu0 0
    %366 = vmatpush.bf16.msra.mxu0 %v357
    %367 = vmatpush.bf16.msra.mxu0 %v356
    %368 = vmatmul.bf16.gmra.mxu0 %v65
    %v369 = vpop.f32.mrf.mxu0
    %v370 = vadd.f32 0.0, %v369
    %v371 = vpop.f32.mrf.mxu0
    %v372 = vadd.f32 0.0, %v371
    %373 = vmatmul.bf16.gmra.mxu0 %v68
    %v374 = vpop.f32.mrf.mxu0
    %v375 = vadd.f32 0.0, %v374
    %v376 = vpop.f32.mrf.mxu0
    %v377 = vadd.f32 0.0, %v376
    %378 = vdwg.mxu0
    %v379 = vpack.c.bf16 %v370, %v370
    %v380 = vpack.c.bf16 %v372, %v372
    %v381 = vpack.c.bf16 %v375, %v375
    %v382 = vpack.c.bf16 %v377, %v377
    %s383 = scalar_lea.vmem %s5, 16
    %v384 = vld [vmem:[%s383] sm:$0xf]
    %v385 = vld [vmem:[%s383 + $0x4] sm:$0xf]
    %v386 = vld [vmem:[%s383 + $0x8] sm:$0xf]
    %v387 = vld [vmem:[%s383 + $0xc] sm:$0xf]
    %v392 = vunpack.c.l.b16 %v384
    %v393 = vunpack.c.l.b16 %v385
    %v394 = vunpack.c.l.b16 %v386
    %v395 = vunpack.c.l.b16 %v387
    %v396 = vpack.c.b16 %v393, %v392
    %v397 = vpack.c.b16 %v395, %v394
    %400 = vmatpush.bf16.msra.mxu0 0
    %401 = vmatpush.bf16.msra.mxu0 0
    %402 = vmatpush.bf16.msra.mxu0 0
    %403 = vmatpush.bf16.msra.mxu0 0
    %404 = vmatpush.bf16.msra.mxu0 0
    %405 = vmatpush.bf16.msra.mxu0 0
    %406 = vmatpush.bf16.msra.mxu0 %v397
    %407 = vmatpush.bf16.msra.mxu0 %v396
    %408 = vmatmul.bf16.gmra.mxu0 %v115
    %v409 = vpop.f32.mrf.mxu0
    %v410 = vadd.f32 0.0, %v409
    %v411 = vpop.f32.mrf.mxu0
    %v412 = vadd.f32 0.0, %v411
    %413 = vdwg.mxu0
    %v414 = vpack.c.bf16 %v410, %v410
    %v415 = vpack.c.bf16 %v412, %v412
    %s416 = scalar_lea.vmem %s4, 8
    %v417 = vld [vmem:[%s416] sm:$0xf]
    %v418 = vld [vmem:[%s416 + $0x4] sm:$0xf]
    %v421 = vunpack.c.l.b16 %v417
    %v422 = vunpack.c.l.b16 %v418
    %v423 = vpack.c.b16 %v422, %v421
    %v425 = vsel %vm63, %v423, 0
    %427 = vmatpush.bf16.msra.mxu0 0
    %428 = vmatpush.bf16.msra.mxu0 0
    %429 = vmatpush.bf16.msra.mxu0 0
    %430 = vmatpush.bf16.msra.mxu0 0
    %431 = vmatpush.bf16.msra.mxu0 0
    %432 = vmatpush.bf16.msra.mxu0 0
    %433 = vmatpush.bf16.msra.mxu0 %v153
    %434 = vmatpush.bf16.msra.mxu0 %v152
    %435 = vmatmul.bf16.gmra.mxu0 %v425
    %v436 = vpop.f32.mrf.mxu0
    %v437 = vadd.f32 0.0, %v436
    %v438 = vpop.f32.mrf.mxu0
    %v439 = vadd.f32 0.0, %v438
    %440 = vdwg.mxu0
    %v441 = vpack.c.bf16 %v439, %v437
    %v444 = vunpack.c.l.b16 %v379
    %v445 = vunpack.c.l.b16 %v380
    %v446 = vpack.c.b16 %v445, %v444
    %v448 = vsel %vm179, %v446, 0
    %450 = vmatpush.bf16.msra.mxu0 0
    %451 = vmatpush.bf16.msra.mxu0 0
    %452 = vmatpush.bf16.msra.mxu0 0
    %453 = vmatpush.bf16.msra.mxu0 0
    %454 = vmatpush.bf16.msra.mxu0 0
    %455 = vmatpush.bf16.msra.mxu0 0
    %456 = vmatpush.bf16.msra.mxu0 0
    %457 = vmatpush.bf16.msra.mxu0 %v441
    %458 = vmatmul.bf16.gmra.mxu0 %v448
    %v459 = vpop.f32.mrf.mxu0
    %v460 = vadd.f32 0.0, %v459
    %v461 = vpop.f32.mrf.mxu0
    %v462 = vadd.f32 0.0, %v461
    %463 = vdwg.mxu0
    %v464 = vsel %vm197, %v460, -inf
    %465 = vmax.xlane.f32.xlu0 %v464
    %v466 = vpop.xlane.xlu0 %465
    %v467 = vsel %vm197, %v462, -inf
    %468 = vmax.xlane.f32.xlu0 %v467
    %v469 = vpop.xlane.xlu0 %468
    %v470 = vsub.f32 %v460, %v466
    %v471 = vsub.f32 %v462, %v469
    %v472 = vmul.f32 %v470, 1.442695
    %v473 = vpow.pop %v472
    %v474 = vmul.f32 %v471, 1.442695
    %v475 = vpow.pop %v474
    %v476 = vsel %vm197, %v473, 0.0
    %477 = vadd.xlane.f32.xlu0 %v476
    %v478 = vpop.xlane.xlu0 %477
    %v479 = vsel %vm197, %v475, 0.0
    %480 = vadd.xlane.f32.xlu0 %v479
    %v481 = vpop.xlane.xlu0 %480
    %v482 = vrcp.pop %v478
    %v483 = vrcp.pop %v481
    %v484 = vmul.f32 %v473, %v482
    %v485 = vmul.f32 %v475, %v483
    %v486 = vpack.c.bf16 %v485, %v484
    %v488 = vsel %vm197, %v486, 0
    %v491 = vsel %vm224, %v414, 0
    %493 = vmatpush.bf16.msra.mxu0 0
    %494 = vmatpush.bf16.msra.mxu0 0
    %495 = vmatpush.bf16.msra.mxu0 0
    %496 = vmatpush.bf16.msra.mxu0 0
    %497 = vmatpush.bf16.msra.mxu0 0
    %498 = vmatpush.bf16.msra.mxu0 0
    %499 = vmatpush.bf16.msra.mxu0 0
    %500 = vmatpush.bf16.msra.mxu0 %v491
    %501 = vmatmul.bf16.gmra.mxu0 %v488
    %v502 = vpop.f32.mrf.mxu0
    %v503 = vadd.f32 0.0, %v502
    %v504 = vpop.f32.mrf.mxu0
    %v505 = vadd.f32 0.0, %v504
    %506 = vdwg.mxu0
    %507 = vmatpush.bf16.msra.mxu0 0
    %508 = vmatpush.bf16.msra.mxu0 0
    %509 = vmatpush.bf16.msra.mxu0 0
    %510 = vmatpush.bf16.msra.mxu0 0
    %511 = vmatpush.bf16.msra.mxu0 0
    %512 = vmatpush.bf16.msra.mxu0 0
    %513 = vmatpush.bf16.msra.mxu0 %v256
    %514 = vmatpush.bf16.msra.mxu0 %v255
    %515 = vmatmul.bf16.gmra.mxu0 %v425
    %v516 = vpop.f32.mrf.mxu0
    %v517 = vadd.f32 0.0, %v516
    %v518 = vpop.f32.mrf.mxu0
    %v519 = vadd.f32 0.0, %v518
    %520 = vdwg.mxu0
    %v521 = vpack.c.bf16 %v519, %v517
    %v524 = vunpack.c.l.b16 %v381
    %v525 = vunpack.c.l.b16 %v382
    %v526 = vpack.c.b16 %v525, %v524
    %v528 = vsel %vm179, %v526, 0
    %530 = vmatpush.bf16.msra.mxu0 0
    %531 = vmatpush.bf16.msra.mxu0 0
    %532 = vmatpush.bf16.msra.mxu0 0
    %533 = vmatpush.bf16.msra.mxu0 0
    %534 = vmatpush.bf16.msra.mxu0 0
    %535 = vmatpush.bf16.msra.mxu0 0
    %536 = vmatpush.bf16.msra.mxu0 0
    %537 = vmatpush.bf16.msra.mxu0 %v521
    %538 = vmatmul.bf16.gmra.mxu0 %v528
    %v539 = vpop.f32.mrf.mxu0
    %v540 = vadd.f32 0.0, %v539
    %v541 = vpop.f32.mrf.mxu0
    %v542 = vadd.f32 0.0, %v541
    %543 = vdwg.mxu0
    %v544 = vsel %vm197, %v540, -inf
    %545 = vmax.xlane.f32.xlu0 %v544
    %v546 = vpop.xlane.xlu0 %545
    %v547 = vsel %vm197, %v542, -inf
    %548 = vmax.xlane.f32.xlu0 %v547
    %v549 = vpop.xlane.xlu0 %548
    %v550 = vsub.f32 %v540, %v546
    %v551 = vsub.f32 %v542, %v549
    %v552 = vmul.f32 %v550, 1.442695
    %v553 = vpow.pop %v552
    %v554 = vmul.f32 %v551, 1.442695
    %v555 = vpow.pop %v554
    %v556 = vsel %vm197, %v553, 0.0
    %557 = vadd.xlane.f32.xlu0 %v556
    %v558 = vpop.xlane.xlu0 %557
    %v559 = vsel %vm197, %v555, 0.0
    %560 = vadd.xlane.f32.xlu0 %v559
    %v561 = vpop.xlane.xlu0 %560
    %v562 = vrcp.pop %v558
    %v563 = vrcp.pop %v561
    %v564 = vmul.f32 %v553, %v562
    %v565 = vmul.f32 %v555, %v563
    %v566 = vpack.c.bf16 %v565, %v564
    %v568 = vsel %vm197, %v566, 0
    %v571 = vsel %vm224, %v415, 0
    %573 = vmatpush.bf16.msra.mxu0 0
    %574 = vmatpush.bf16.msra.mxu0 0
    %575 = vmatpush.bf16.msra.mxu0 0
    %576 = vmatpush.bf16.msra.mxu0 0
    %577 = vmatpush.bf16.msra.mxu0 0
    %578 = vmatpush.bf16.msra.mxu0 0
    %579 = vmatpush.bf16.msra.mxu0 0
    %580 = vmatpush.bf16.msra.mxu0 %v571
    %581 = vmatmul.bf16.gmra.mxu0 %v568
    %v582 = vpop.f32.mrf.mxu0
    %v583 = vadd.f32 0.0, %v582
    %v584 = vpop.f32.mrf.mxu0
    %v585 = vadd.f32 0.0, %v584
    %586 = vdwg.mxu0
    %v587 = vpack.c.bf16 %v505, %v503
    %v588 = vpack.c.bf16 %v585, %v583
    %s589 = scalar_lea.vmem %s6, 8
    %v590 = vld [vmem:[%s589] sm:$0xf]
    %v591 = vld [vmem:[%s589 + $0x4] sm:$0xf]
    %v594 = vunpack.c.l.b16 %v590
    %v595 = vunpack.c.l.b16 %v591
    %v596 = vpack.c.b16 %v595, %v594
    %v599 = vsel %vm179, %v587, 0
    %v602 = vsel %vm179, %v588, 0
    %604 = vmatpush.bf16.msra.mxu0 0
    %605 = vmatpush.bf16.msra.mxu0 0
    %606 = vmatpush.bf16.msra.mxu0 0
    %607 = vmatpush.bf16.msra.mxu0 0
    %608 = vmatpush.bf16.msra.mxu0 0
    %609 = vmatpush.bf16.msra.mxu0 0
    %610 = vmatpush.bf16.msra.mxu0 0
    %611 = vmatpush.bf16.msra.mxu0 %v596
    %612 = vmatmul.bf16.gmra.mxu0 %v599
    %v613 = vpop.f32.mrf.mxu0
    %v614 = vadd.f32 0.0, %v613
    %v615 = vpop.f32.mrf.mxu0
    %v616 = vadd.f32 0.0, %v615
    %617 = vmatmul.bf16.gmra.mxu0 %v602
    %v618 = vpop.f32.mrf.mxu0
    %v619 = vadd.f32 0.0, %v618
    %v620 = vpop.f32.mrf.mxu0
    %v621 = vadd.f32 0.0, %v620
    %622 = vdwg.mxu0
    %v625 = vunpack.c.l.b16 %v341
    %v626 = vunpack.c.l.b16 %v342
    %v627 = vpack.c.b16 %v626, %v625
    %v630 = vsel %vm179, %v339, 0
    %v633 = vsel %vm179, %v340, 0
    %635 = vmatpush.bf16.msra.mxu0 0
    %636 = vmatpush.bf16.msra.mxu0 0
    %637 = vmatpush.bf16.msra.mxu0 0
    %638 = vmatpush.bf16.msra.mxu0 0
    %639 = vmatpush.bf16.msra.mxu0 0
    %640 = vmatpush.bf16.msra.mxu0 0
    %641 = vmatpush.bf16.msra.mxu0 0
    %642 = vmatpush.bf16.msra.mxu0 %v627
    %643 = vmatmul.bf16.gmra.mxu0 %v630
    %v644 = vpop.f32.mrf.mxu0
    %v645 = vadd.f32 %v614, %v644
    %v646 = vpop.f32.mrf.mxu0
    %v647 = vadd.f32 %v616, %v646
    %648 = vmatmul.bf16.gmra.mxu0 %v633
    %v649 = vpop.f32.mrf.mxu0
    %v650 = vadd.f32 %v619, %v649
    %v651 = vpop.f32.mrf.mxu0
    %v652 = vadd.f32 %v621, %v651
    %653 = vdwg.mxu0
    %s654 = scalar_lea.vmem %s3, 32
    %v655 = vld [vmem:[%s654] sm:$0xf]
    %v656 = vld [vmem:[%s654 + $0x4] sm:$0xf]
    %v657 = vld [vmem:[%s654 + $0x8] sm:$0xf]
    %v658 = vld [vmem:[%s654 + $0xc] sm:$0xf]
    %v663 = vunpack.c.l.b16 %v655
    %v664 = vunpack.c.l.b16 %v656
    %v665 = vunpack.c.l.b16 %v657
    %v666 = vunpack.c.l.b16 %v658
    %v667 = vpack.c.b16 %v664, %v663
    %v668 = vpack.c.b16 %v666, %v665
    %671 = vmatpush.bf16.msra.mxu0 0
    %672 = vmatpush.bf16.msra.mxu0 0
    %673 = vmatpush.bf16.msra.mxu0 0
    %674 = vmatpush.bf16.msra.mxu0 0
    %675 = vmatpush.bf16.msra.mxu0 0
    %676 = vmatpush.bf16.msra.mxu0 0
    %677 = vmatpush.bf16.msra.mxu0 %v668
    %678 = vmatpush.bf16.msra.mxu0 %v667
    %679 = vmatmul.bf16.gmra.mxu0 %v65
    %v680 = vpop.f32.mrf.mxu0
    %v681 = vadd.f32 0.0, %v680
    %v682 = vpop.f32.mrf.mxu0
    %v683 = vadd.f32 0.0, %v682
    %684 = vmatmul.bf16.gmra.mxu0 %v68
    %v685 = vpop.f32.mrf.mxu0
    %v686 = vadd.f32 0.0, %v685
    %v687 = vpop.f32.mrf.mxu0
    %v688 = vadd.f32 0.0, %v687
    %689 = vdwg.mxu0
    %v690 = vpack.c.bf16 %v681, %v681
    %v691 = vpack.c.bf16 %v683, %v683
    %v692 = vpack.c.bf16 %v686, %v686
    %v693 = vpack.c.bf16 %v688, %v688
    %s694 = scalar_lea.vmem %s5, 32
    %v695 = vld [vmem:[%s694] sm:$0xf]
    %v696 = vld [vmem:[%s694 + $0x4] sm:$0xf]
    %v697 = vld [vmem:[%s694 + $0x8] sm:$0xf]
    %v698 = vld [vmem:[%s694 + $0xc] sm:$0xf]
    %v703 = vunpack.c.l.b16 %v695
    %v704 = vunpack.c.l.b16 %v696
    %v705 = vunpack.c.l.b16 %v697
    %v706 = vunpack.c.l.b16 %v698
    %v707 = vpack.c.b16 %v704, %v703
    %v708 = vpack.c.b16 %v706, %v705
    %711 = vmatpush.bf16.msra.mxu0 0
    %712 = vmatpush.bf16.msra.mxu0 0
    %713 = vmatpush.bf16.msra.mxu0 0
    %714 = vmatpush.bf16.msra.mxu0 0
    %715 = vmatpush.bf16.msra.mxu0 0
    %716 = vmatpush.bf16.msra.mxu0 0
    %717 = vmatpush.bf16.msra.mxu0 %v708
    %718 = vmatpush.bf16.msra.mxu0 %v707
    %719 = vmatmul.bf16.gmra.mxu0 %v115
    %v720 = vpop.f32.mrf.mxu0
    %v721 = vadd.f32 0.0, %v720
    %v722 = vpop.f32.mrf.mxu0
    %v723 = vadd.f32 0.0, %v722
    %724 = vdwg.mxu0
    %v725 = vpack.c.bf16 %v721, %v721
    %v726 = vpack.c.bf16 %v723, %v723
    %s727 = scalar_lea.vmem %s4, 16
    %v728 = vld [vmem:[%s727] sm:$0xf]
    %v729 = vld [vmem:[%s727 + $0x4] sm:$0xf]
    %v732 = vunpack.c.l.b16 %v728
    %v733 = vunpack.c.l.b16 %v729
    %v734 = vpack.c.b16 %v733, %v732
    %v736 = vsel %vm63, %v734, 0
    %738 = vmatpush.bf16.msra.mxu0 0
    %739 = vmatpush.bf16.msra.mxu0 0
    %740 = vmatpush.bf16.msra.mxu0 0
    %741 = vmatpush.bf16.msra.mxu0 0
    %742 = vmatpush.bf16.msra.mxu0 0
    %743 = vmatpush.bf16.msra.mxu0 0
    %744 = vmatpush.bf16.msra.mxu0 %v153
    %745 = vmatpush.bf16.msra.mxu0 %v152
    %746 = vmatmul.bf16.gmra.mxu0 %v736
    %v747 = vpop.f32.mrf.mxu0
    %v748 = vadd.f32 0.0, %v747
    %v749 = vpop.f32.mrf.mxu0
    %v750 = vadd.f32 0.0, %v749
    %751 = vdwg.mxu0
    %v752 = vpack.c.bf16 %v750, %v748
    %v755 = vunpack.c.l.b16 %v690
    %v756 = vunpack.c.l.b16 %v691
    %v757 = vpack.c.b16 %v756, %v755
    %v759 = vsel %vm179, %v757, 0
    %761 = vmatpush.bf16.msra.mxu0 0
    %762 = vmatpush.bf16.msra.mxu0 0
    %763 = vmatpush.bf16.msra.mxu0 0
    %764 = vmatpush.bf16.msra.mxu0 0
    %765 = vmatpush.bf16.msra.mxu0 0
    %766 = vmatpush.bf16.msra.mxu0 0
    %767 = vmatpush.bf16.msra.mxu0 0
    %768 = vmatpush.bf16.msra.mxu0 %v752
    %769 = vmatmul.bf16.gmra.mxu0 %v759
    %v770 = vpop.f32.mrf.mxu0
    %v771 = vadd.f32 0.0, %v770
    %v772 = vpop.f32.mrf.mxu0
    %v773 = vadd.f32 0.0, %v772
    %774 = vdwg.mxu0
    %v775 = vsel %vm197, %v771, -inf
    %776 = vmax.xlane.f32.xlu0 %v775
    %v777 = vpop.xlane.xlu0 %776
    %v778 = vsel %vm197, %v773, -inf
    %779 = vmax.xlane.f32.xlu0 %v778
    %v780 = vpop.xlane.xlu0 %779
    %v781 = vsub.f32 %v771, %v777
    %v782 = vsub.f32 %v773, %v780
    %v783 = vmul.f32 %v781, 1.442695
    %v784 = vpow.pop %v783
    %v785 = vmul.f32 %v782, 1.442695
    %v786 = vpow.pop %v785
    %v787 = vsel %vm197, %v784, 0.0
    %788 = vadd.xlane.f32.xlu0 %v787
    %v789 = vpop.xlane.xlu0 %788
    %v790 = vsel %vm197, %v786, 0.0
    %791 = vadd.xlane.f32.xlu0 %v790
    %v792 = vpop.xlane.xlu0 %791
    %v793 = vrcp.pop %v789
    %v794 = vrcp.pop %v792
    %v795 = vmul.f32 %v784, %v793
    %v796 = vmul.f32 %v786, %v794
    %v797 = vpack.c.bf16 %v796, %v795
    %v799 = vsel %vm197, %v797, 0
    %v802 = vsel %vm224, %v725, 0
    %804 = vmatpush.bf16.msra.mxu0 0
    %805 = vmatpush.bf16.msra.mxu0 0
    %806 = vmatpush.bf16.msra.mxu0 0
    %807 = vmatpush.bf16.msra.mxu0 0
    %808 = vmatpush.bf16.msra.mxu0 0
    %809 = vmatpush.bf16.msra.mxu0 0
    %810 = vmatpush.bf16.msra.mxu0 0
    %811 = vmatpush.bf16.msra.mxu0 %v802
    %812 = vmatmul.bf16.gmra.mxu0 %v799
    %v813 = vpop.f32.mrf.mxu0
    %v814 = vadd.f32 0.0, %v813
    %v815 = vpop.f32.mrf.mxu0
    %v816 = vadd.f32 0.0, %v815
    %817 = vdwg.mxu0
    %818 = vmatpush.bf16.msra.mxu0 0
    %819 = vmatpush.bf16.msra.mxu0 0
    %820 = vmatpush.bf16.msra.mxu0 0
    %821 = vmatpush.bf16.msra.mxu0 0
    %822 = vmatpush.bf16.msra.mxu0 0
    %823 = vmatpush.bf16.msra.mxu0 0
    %824 = vmatpush.bf16.msra.mxu0 %v256
    %825 = vmatpush.bf16.msra.mxu0 %v255
    %826 = vmatmul.bf16.gmra.mxu0 %v736
    %v827 = vpop.f32.mrf.mxu0
    %v828 = vadd.f32 0.0, %v827
    %v829 = vpop.f32.mrf.mxu0
    %v830 = vadd.f32 0.0, %v829
    %831 = vdwg.mxu0
    %v832 = vpack.c.bf16 %v830, %v828
    %v835 = vunpack.c.l.b16 %v692
    %v836 = vunpack.c.l.b16 %v693
    %v837 = vpack.c.b16 %v836, %v835
    %v839 = vsel %vm179, %v837, 0
    %841 = vmatpush.bf16.msra.mxu0 0
    %842 = vmatpush.bf16.msra.mxu0 0
    %843 = vmatpush.bf16.msra.mxu0 0
    %844 = vmatpush.bf16.msra.mxu0 0
    %845 = vmatpush.bf16.msra.mxu0 0
    %846 = vmatpush.bf16.msra.mxu0 0
    %847 = vmatpush.bf16.msra.mxu0 0
    %848 = vmatpush.bf16.msra.mxu0 %v832
    %849 = vmatmul.bf16.gmra.mxu0 %v839
    %v850 = vpop.f32.mrf.mxu0
    %v851 = vadd.f32 0.0, %v850
    %v852 = vpop.f32.mrf.mxu0
    %v853 = vadd.f32 0.0, %v852
    %854 = vdwg.mxu0
    %v855 = vsel %vm197, %v851, -inf
    %856 = vmax.xlane.f32.xlu0 %v855
    %v857 = vpop.xlane.xlu0 %856
    %v858 = vsel %vm197, %v853, -inf
    %859 = vmax.xlane.f32.xlu0 %v858
    %v860 = vpop.xlane.xlu0 %859
    %v861 = vsub.f32 %v851, %v857
    %v862 = vsub.f32 %v853, %v860
    %v863 = vmul.f32 %v861, 1.442695
    %v864 = vpow.pop %v863
    %v865 = vmul.f32 %v862, 1.442695
    %v866 = vpow.pop %v865
    %v867 = vsel %vm197, %v864, 0.0
    %868 = vadd.xlane.f32.xlu0 %v867
    %v869 = vpop.xlane.xlu0 %868
    %v870 = vsel %vm197, %v866, 0.0
    %871 = vadd.xlane.f32.xlu0 %v870
    %v872 = vpop.xlane.xlu0 %871
    %v873 = vrcp.pop %v869
    %v874 = vrcp.pop %v872
    %v875 = vmul.f32 %v864, %v873
    %v876 = vmul.f32 %v866, %v874
    %v877 = vpack.c.bf16 %v876, %v875
    %v879 = vsel %vm197, %v877, 0
    %v882 = vsel %vm224, %v726, 0
    %884 = vmatpush.bf16.msra.mxu0 0
    %885 = vmatpush.bf16.msra.mxu0 0
    %886 = vmatpush.bf16.msra.mxu0 0
    %887 = vmatpush.bf16.msra.mxu0 0
    %888 = vmatpush.bf16.msra.mxu0 0
    %889 = vmatpush.bf16.msra.mxu0 0
    %890 = vmatpush.bf16.msra.mxu0 0
    %891 = vmatpush.bf16.msra.mxu0 %v882
    %892 = vmatmul.bf16.gmra.mxu0 %v879
    %v893 = vpop.f32.mrf.mxu0
    %v894 = vadd.f32 0.0, %v893
    %v895 = vpop.f32.mrf.mxu0
    %v896 = vadd.f32 0.0, %v895
    %897 = vdwg.mxu0
    %v898 = vpack.c.bf16 %v816, %v814
    %v899 = vpack.c.bf16 %v896, %v894
    %s900 = scalar_lea.vmem %s6, 16
    %v901 = vld [vmem:[%s900] sm:$0xf]
    %v902 = vld [vmem:[%s900 + $0x4] sm:$0xf]
    %v905 = vunpack.c.l.b16 %v901
    %v906 = vunpack.c.l.b16 %v902
    %v907 = vpack.c.b16 %v906, %v905
    %v910 = vsel %vm179, %v898, 0
    %v913 = vsel %vm179, %v899, 0
    %915 = vmatpush.bf16.msra.mxu0 0
    %916 = vmatpush.bf16.msra.mxu0 0
    %917 = vmatpush.bf16.msra.mxu0 0
    %918 = vmatpush.bf16.msra.mxu0 0
    %919 = vmatpush.bf16.msra.mxu0 0
    %920 = vmatpush.bf16.msra.mxu0 0
    %921 = vmatpush.bf16.msra.mxu0 0
    %922 = vmatpush.bf16.msra.mxu0 %v907
    %923 = vmatmul.bf16.gmra.mxu0 %v910
    %v924 = vpop.f32.mrf.mxu0
    %v925 = vadd.f32 0.0, %v924
    %v926 = vpop.f32.mrf.mxu0
    %v927 = vadd.f32 0.0, %v926
    %928 = vmatmul.bf16.gmra.mxu0 %v913
    %v929 = vpop.f32.mrf.mxu0
    %v930 = vadd.f32 0.0, %v929
    %v931 = vpop.f32.mrf.mxu0
    %v932 = vadd.f32 0.0, %v931
    %933 = vdwg.mxu0
    %v934 = vadd.f32 %v645, %v925
    %v935 = vadd.f32 %v647, %v927
    %v936 = vadd.f32 %v650, %v930
    %v937 = vadd.f32 %v652, %v932
    %s938 = scalar_lea.vmem %s3, 48
    %v939 = vld [vmem:[%s938] sm:$0xf]
    %v940 = vld [vmem:[%s938 + $0x4] sm:$0xf]
    %v941 = vld [vmem:[%s938 + $0x8] sm:$0xf]
    %v942 = vld [vmem:[%s938 + $0xc] sm:$0xf]
    %v947 = vunpack.c.l.b16 %v939
    %v948 = vunpack.c.l.b16 %v940
    %v949 = vunpack.c.l.b16 %v941
    %v950 = vunpack.c.l.b16 %v942
    %v951 = vpack.c.b16 %v948, %v947
    %v952 = vpack.c.b16 %v950, %v949
    %955 = vmatpush.bf16.msra.mxu0 0
    %956 = vmatpush.bf16.msra.mxu0 0
    %957 = vmatpush.bf16.msra.mxu0 0
    %958 = vmatpush.bf16.msra.mxu0 0
    %959 = vmatpush.bf16.msra.mxu0 0
    %960 = vmatpush.bf16.msra.mxu0 0
    %961 = vmatpush.bf16.msra.mxu0 %v952
    %962 = vmatpush.bf16.msra.mxu0 %v951
    %963 = vmatmul.bf16.gmra.mxu0 %v65
    %v964 = vpop.f32.mrf.mxu0
    %v965 = vadd.f32 0.0, %v964
    %v966 = vpop.f32.mrf.mxu0
    %v967 = vadd.f32 0.0, %v966
    %968 = vmatmul.bf16.gmra.mxu0 %v68
    %v969 = vpop.f32.mrf.mxu0
    %v970 = vadd.f32 0.0, %v969
    %v971 = vpop.f32.mrf.mxu0
    %v972 = vadd.f32 0.0, %v971
    %973 = vdwg.mxu0
    %v974 = vpack.c.bf16 %v965, %v965
    %v975 = vpack.c.bf16 %v967, %v967
    %v976 = vpack.c.bf16 %v970, %v970
    %v977 = vpack.c.bf16 %v972, %v972
    %s978 = scalar_lea.vmem %s5, 48
    %v979 = vld [vmem:[%s978] sm:$0xf]
    %v980 = vld [vmem:[%s978 + $0x4] sm:$0xf]
    %v981 = vld [vmem:[%s978 + $0x8] sm:$0xf]
    %v982 = vld [vmem:[%s978 + $0xc] sm:$0xf]
    %v987 = vunpack.c.l.b16 %v979
    %v988 = vunpack.c.l.b16 %v980
    %v989 = vunpack.c.l.b16 %v981
    %v990 = vunpack.c.l.b16 %v982
    %v991 = vpack.c.b16 %v988, %v987
    %v992 = vpack.c.b16 %v990, %v989
    %995 = vmatpush.bf16.msra.mxu0 0
    %996 = vmatpush.bf16.msra.mxu0 0
    %997 = vmatpush.bf16.msra.mxu0 0
    %998 = vmatpush.bf16.msra.mxu0 0
    %999 = vmatpush.bf16.msra.mxu0 0
    %1000 = vmatpush.bf16.msra.mxu0 0
    %1001 = vmatpush.bf16.msra.mxu0 %v992
    %1002 = vmatpush.bf16.msra.mxu0 %v991
    %1003 = vmatmul.bf16.gmra.mxu0 %v115
    %v1004 = vpop.f32.mrf.mxu0
    %v1005 = vadd.f32 0.0, %v1004
    %v1006 = vpop.f32.mrf.mxu0
    %v1007 = vadd.f32 0.0, %v1006
    %1008 = vdwg.mxu0
    %v1009 = vpack.c.bf16 %v1005, %v1005
    %v1010 = vpack.c.bf16 %v1007, %v1007
    %s1011 = scalar_lea.vmem %s4, 24
    %v1012 = vld [vmem:[%s1011] sm:$0xf]
    %v1013 = vld [vmem:[%s1011 + $0x4] sm:$0xf]
    %v1016 = vunpack.c.l.b16 %v1012
    %v1017 = vunpack.c.l.b16 %v1013
    %v1018 = vpack.c.b16 %v1017, %v1016
    %v1020 = vsel %vm63, %v1018, 0
    %1022 = vmatpush.bf16.msra.mxu0 0
    %1023 = vmatpush.bf16.msra.mxu0 0
    %1024 = vmatpush.bf16.msra.mxu0 0
    %1025 = vmatpush.bf16.msra.mxu0 0
    %1026 = vmatpush.bf16.msra.mxu0 0
    %1027 = vmatpush.bf16.msra.mxu0 0
    %1028 = vmatpush.bf16.msra.mxu0 %v153
    %1029 = vmatpush.bf16.msra.mxu0 %v152
    %1030 = vmatmul.bf16.gmra.mxu0 %v1020
    %v1031 = vpop.f32.mrf.mxu0
    %v1032 = vadd.f32 0.0, %v1031
    %v1033 = vpop.f32.mrf.mxu0
    %v1034 = vadd.f32 0.0, %v1033
    %1035 = vdwg.mxu0
    %v1036 = vpack.c.bf16 %v1034, %v1032
    %v1039 = vunpack.c.l.b16 %v974
    %v1040 = vunpack.c.l.b16 %v975
    %v1041 = vpack.c.b16 %v1040, %v1039
    %v1043 = vsel %vm179, %v1041, 0
    %1045 = vmatpush.bf16.msra.mxu0 0
    %1046 = vmatpush.bf16.msra.mxu0 0
    %1047 = vmatpush.bf16.msra.mxu0 0
    %1048 = vmatpush.bf16.msra.mxu0 0
    %1049 = vmatpush.bf16.msra.mxu0 0
    %1050 = vmatpush.bf16.msra.mxu0 0
    %1051 = vmatpush.bf16.msra.mxu0 0
    %1052 = vmatpush.bf16.msra.mxu0 %v1036
    %1053 = vmatmul.bf16.gmra.mxu0 %v1043
    %v1054 = vpop.f32.mrf.mxu0
    %v1055 = vadd.f32 0.0, %v1054
    %v1056 = vpop.f32.mrf.mxu0
    %v1057 = vadd.f32 0.0, %v1056
    %1058 = vdwg.mxu0
    %v1059 = vsel %vm197, %v1055, -inf
    %1060 = vmax.xlane.f32.xlu0 %v1059
    %v1061 = vpop.xlane.xlu0 %1060
    %v1062 = vsel %vm197, %v1057, -inf
    %1063 = vmax.xlane.f32.xlu0 %v1062
    %v1064 = vpop.xlane.xlu0 %1063
    %v1065 = vsub.f32 %v1055, %v1061
    %v1066 = vsub.f32 %v1057, %v1064
    %v1067 = vmul.f32 %v1065, 1.442695
    %v1068 = vpow.pop %v1067
    %v1069 = vmul.f32 %v1066, 1.442695
    %v1070 = vpow.pop %v1069
    %v1071 = vsel %vm197, %v1068, 0.0
    %1072 = vadd.xlane.f32.xlu0 %v1071
    %v1073 = vpop.xlane.xlu0 %1072
    %v1074 = vsel %vm197, %v1070, 0.0
    %1075 = vadd.xlane.f32.xlu0 %v1074
    %v1076 = vpop.xlane.xlu0 %1075
    %v1077 = vrcp.pop %v1073
    %v1078 = vrcp.pop %v1076
    %v1079 = vmul.f32 %v1068, %v1077
    %v1080 = vmul.f32 %v1070, %v1078
    %v1081 = vpack.c.bf16 %v1080, %v1079
    %v1083 = vsel %vm197, %v1081, 0
    %v1086 = vsel %vm224, %v1009, 0
    %1088 = vmatpush.bf16.msra.mxu0 0
    %1089 = vmatpush.bf16.msra.mxu0 0
    %1090 = vmatpush.bf16.msra.mxu0 0
    %1091 = vmatpush.bf16.msra.mxu0 0
    %1092 = vmatpush.bf16.msra.mxu0 0
    %1093 = vmatpush.bf16.msra.mxu0 0
    %1094 = vmatpush.bf16.msra.mxu0 0
    %1095 = vmatpush.bf16.msra.mxu0 %v1086
    %1096 = vmatmul.bf16.gmra.mxu0 %v1083
    %v1097 = vpop.f32.mrf.mxu0
    %v1098 = vadd.f32 0.0, %v1097
    %v1099 = vpop.f32.mrf.mxu0
    %v1100 = vadd.f32 0.0, %v1099
    %1101 = vdwg.mxu0
    %1102 = vmatpush.bf16.msra.mxu0 0
    %1103 = vmatpush.bf16.msra.mxu0 0
    %1104 = vmatpush.bf16.msra.mxu0 0
    %1105 = vmatpush.bf16.msra.mxu0 0
    %1106 = vmatpush.bf16.msra.mxu0 0
    %1107 = vmatpush.bf16.msra.mxu0 0
    %1108 = vmatpush.bf16.msra.mxu0 %v256
    %1109 = vmatpush.bf16.msra.mxu0 %v255
    %1110 = vmatmul.bf16.gmra.mxu0 %v1020
    %v1111 = vpop.f32.mrf.mxu0
    %v1112 = vadd.f32 0.0, %v1111
    %v1113 = vpop.f32.mrf.mxu0
    %v1114 = vadd.f32 0.0, %v1113
    %1115 = vdwg.mxu0
    %v1116 = vpack.c.bf16 %v1114, %v1112
    %v1119 = vunpack.c.l.b16 %v976
    %v1120 = vunpack.c.l.b16 %v977
    %v1121 = vpack.c.b16 %v1120, %v1119
    %v1123 = vsel %vm179, %v1121, 0
    %1125 = vmatpush.bf16.msra.mxu0 0
    %1126 = vmatpush.bf16.msra.mxu0 0
    %1127 = vmatpush.bf16.msra.mxu0 0
    %1128 = vmatpush.bf16.msra.mxu0 0
    %1129 = vmatpush.bf16.msra.mxu0 0
    %1130 = vmatpush.bf16.msra.mxu0 0
    %1131 = vmatpush.bf16.msra.mxu0 0
    %1132 = vmatpush.bf16.msra.mxu0 %v1116
    %1133 = vmatmul.bf16.gmra.mxu0 %v1123
    %v1134 = vpop.f32.mrf.mxu0
    %v1135 = vadd.f32 0.0, %v1134
    %v1136 = vpop.f32.mrf.mxu0
    %v1137 = vadd.f32 0.0, %v1136
    %1138 = vdwg.mxu0
    %v1139 = vsel %vm197, %v1135, -inf
    %1140 = vmax.xlane.f32.xlu0 %v1139
    %v1141 = vpop.xlane.xlu0 %1140
    %v1142 = vsel %vm197, %v1137, -inf
    %1143 = vmax.xlane.f32.xlu0 %v1142
    %v1144 = vpop.xlane.xlu0 %1143
    %v1145 = vsub.f32 %v1135, %v1141
    %v1146 = vsub.f32 %v1137, %v1144
    %v1147 = vmul.f32 %v1145, 1.442695
    %v1148 = vpow.pop %v1147
    %v1149 = vmul.f32 %v1146, 1.442695
    %v1150 = vpow.pop %v1149
    %v1151 = vsel %vm197, %v1148, 0.0
    %1152 = vadd.xlane.f32.xlu0 %v1151
    %v1153 = vpop.xlane.xlu0 %1152
    %v1154 = vsel %vm197, %v1150, 0.0
    %1155 = vadd.xlane.f32.xlu0 %v1154
    %v1156 = vpop.xlane.xlu0 %1155
    %v1157 = vrcp.pop %v1153
    %v1158 = vrcp.pop %v1156
    %v1159 = vmul.f32 %v1148, %v1157
    %v1160 = vmul.f32 %v1150, %v1158
    %v1161 = vpack.c.bf16 %v1160, %v1159
    %v1163 = vsel %vm197, %v1161, 0
    %v1166 = vsel %vm224, %v1010, 0
    %1168 = vmatpush.bf16.msra.mxu0 0
    %1169 = vmatpush.bf16.msra.mxu0 0
    %1170 = vmatpush.bf16.msra.mxu0 0
    %1171 = vmatpush.bf16.msra.mxu0 0
    %1172 = vmatpush.bf16.msra.mxu0 0
    %1173 = vmatpush.bf16.msra.mxu0 0
    %1174 = vmatpush.bf16.msra.mxu0 0
    %1175 = vmatpush.bf16.msra.mxu0 %v1166
    %1176 = vmatmul.bf16.gmra.mxu0 %v1163
    %v1177 = vpop.f32.mrf.mxu0
    %v1178 = vadd.f32 0.0, %v1177
    %v1179 = vpop.f32.mrf.mxu0
    %v1180 = vadd.f32 0.0, %v1179
    %1181 = vdwg.mxu0
    %v1182 = vpack.c.bf16 %v1100, %v1098
    %v1183 = vpack.c.bf16 %v1180, %v1178
    %s1184 = scalar_lea.vmem %s6, 24
    %v1185 = vld [vmem:[%s1184] sm:$0xf]
    %v1186 = vld [vmem:[%s1184 + $0x4] sm:$0xf]
    %v1189 = vunpack.c.l.b16 %v1185
    %v1190 = vunpack.c.l.b16 %v1186
    %v1191 = vpack.c.b16 %v1190, %v1189
    %v1194 = vsel %vm179, %v1182, 0
    %v1197 = vsel %vm179, %v1183, 0
    %1199 = vmatpush.bf16.msra.mxu0 0
    %1200 = vmatpush.bf16.msra.mxu0 0
    %1201 = vmatpush.bf16.msra.mxu0 0
    %1202 = vmatpush.bf16.msra.mxu0 0
    %1203 = vmatpush.bf16.msra.mxu0 0
    %1204 = vmatpush.bf16.msra.mxu0 0
    %1205 = vmatpush.bf16.msra.mxu0 0
    %1206 = vmatpush.bf16.msra.mxu0 %v1191
    %1207 = vmatmul.bf16.gmra.mxu0 %v1194
    %v1208 = vpop.f32.mrf.mxu0
    %v1209 = vadd.f32 0.0, %v1208
    %v1210 = vpop.f32.mrf.mxu0
    %v1211 = vadd.f32 0.0, %v1210
    %1212 = vmatmul.bf16.gmra.mxu0 %v1197
    %v1213 = vpop.f32.mrf.mxu0
    %v1214 = vadd.f32 0.0, %v1213
    %v1215 = vpop.f32.mrf.mxu0
    %v1216 = vadd.f32 0.0, %v1215
    %1217 = vdwg.mxu0
    %v1218 = vadd.f32 %v934, %v1209
    %v1219 = vadd.f32 %v935, %v1211
    %v1220 = vadd.f32 %v936, %v1214
    %v1221 = vadd.f32 %v937, %v1216
    %v1222 = vld [vmem:[%s7] sm:$0x1]
    %v1224 = vperm.slane %v1222, 0
    %v1226 = vadd.f32 %v1218, %v1224
    %v1227 = vadd.f32 %v1219, %v1224
    %v1228 = vadd.f32 %v1220, %v1224
    %v1229 = vadd.f32 %v1221, %v1224
    %1230 = vst [vmem:[#allocation2] sm:$0xff] %v1226
    %1231 = vst [vmem:[#allocation2 + $0x8] sm:$0xff] %v1227
    %1232 = vst [vmem:[#allocation2 + $0x10] sm:$0xff] %v1228
    %1233 = vst [vmem:[#allocation2 + $0x18] sm:$0xff] %v1229
    // Predicated region
    $region34: #{tpu_custom_call.1} parent=1 // pred_check
      _
    $region35: #{tpu_custom_call.1} parent=1 // pred_check_branch
      %1235 = sbr.rel (0) target = $region37
    $region36: #{tpu_custom_call.1} parent=1 // pred_region
      %1237 = vsyncadd [#allocation3], 0
      %s1238 = sshll.u32 [#allocation2], 4
      %s1239 = int_to_ptr.vmem [resolvable:$true] %s1238
      %s1240 = sshll.u32 %s8, 4
      %s1241 = int_to_ptr.hbm [resolvable:$true] %s1240
      %1246 = dma.vmem_to_hbm [thread:$0]  %s1239, 512, %s1241, [#allocation3], 128, 128, 8
    $region37: #{tpu_custom_call.1} parent=1 // pred_fallthru
      _
    // Predicated region
    $region38: #{tpu_custom_call.1} parent=1 // pred_check
      _
    $region39: #{tpu_custom_call.1} parent=1 // pred_check_branch
      %1248 = sbr.rel (0) target = $region41
    $region40: #{tpu_custom_call.1} parent=1 // pred_region
      %1250 = dma.done [#allocation3], 512
    $region41: #{tpu_custom_call.1} parent=1 // pred_fallthru
      _
    %1251 = vsyncpa [#allocation3], 1

</llo_original>
